<compile_context>
chip_gen: v5e
topology: v5e:2x2
jax: 0.10.0
libtpu: 0.0.40
codegen_flags: <defaults>
</compile_context>

<pallas_src>
import functools
import math

import jax
import jax.numpy as jnp
from jax.experimental import pallas as pl
from jax.experimental.pallas import tpu as pltpu


# ---------------------------------------------------------------------------- weight slab packing

class _SlabBuilder:
    """Packs many tiny f32 arrays into two contiguous slabs:
         mats: (MR, total_cols)  matrices concatenated along columns, rows zero-padded to MR
         vecs: (n_rows, VW)      row vectors stacked, zero-padded to width VW
       Offsets are plain Python ints recorded for static in-kernel slicing."""

    def __init__(self, max_rows, vec_width):
        self.MR = max_rows
        self.VW = vec_width
        self._mats, self._vecs = [], []
        self.mat_off, self.vec_off = {}, {}
        self._col, self._row = 0, 0

    def add_mat(self, name, a):
        a = jnp.asarray(a, jnp.float32)
        r, c = a.shape
        assert r <= self.MR
        self.mat_off[name] = (self._col, r, c)
        self._mats.append(jnp.pad(a, ((0, self.MR - r), (0, 0))))
        self._col += c

    def add_vec(self, name, a):
        a = jnp.ravel(jnp.asarray(a, jnp.float32))
        n = a.shape[0]
        assert n <= self.VW
        self.vec_off[name] = (self._row, n)
        self._vecs.append(jnp.pad(a, (0, self.VW - n)))
        self._row += 1

    def build(self):
        return jnp.concatenate(self._mats, axis=1), jnp.stack(self._vecs, axis=0)


# ---------------------------------------------------------------------------- fused kernel

def _fused_kernel(src_ref, tgt_ref, mats_ref, vecs_ref, out_ref,
                  *, moff, voff, D, S, FF, block_b):
    # Memoized static-slice loads of the two packed weight slabs (loaded once per grid step).
    _m, _v = {}, {}

    def mat(name):
        if name not in _m:
            c0, r, c = moff[name]
            _m[name] = mats_ref[0:r, c0:c0 + c]
        return _m[name]

    def vec(name):
        if name not in _v:
            r, n = voff[name]
            _v[name] = vecs_ref[r:r + 1, 0:n]          # (1, n)
        return _v[name]

    def layer_norm(x, g, b, eps=1e-5):
        mu = jnp.mean(x, axis=-1, keepdims=True)
        xc = x - mu
        var = jnp.mean(xc * xc, axis=-1, keepdims=True)
        return xc * jax.lax.rsqrt(var + eps) * vec(g) + vec(b)

    def attn(q, k, v):
        # nhead == d_model => head_dim == 1: head h lives in feature column h.
        # Scores laid out (H, Sq, Sk) so the reduction axis Sk sits on lanes.
        qT, kT, vT = q.T, k.T, v.T                     # (H, S)
        s = qT[:, :, None] * kT[:, None, :]            # (H, Sq, Sk); softmax scale pre-folded into Q
        m = jnp.max(s, axis=-1, keepdims=True)
        p = jnp.exp(s - m)
        p = p / jnp.sum(p, axis=-1, keepdims=True)     # exact softmax (tracks torch numerics)
        return jnp.sum(p * vT[:, None, :], axis=-1).T  # (Sq, H)

    def self_block(x, pfx):
        # fused QKV: one (S,D)@(D,3D) matmul instead of three tiny MXU pushes
        qkv = jnp.dot(x, mat(pfx + "_wqkv"), preferred_element_type=jnp.float32) + vec(pfx + "_bqkv")
        a = attn(qkv[:, 0:D], qkv[:, D:2 * D], qkv[:, 2 * D:3 * D])
        sa = jnp.dot(a, mat(pfx + "_wo"), preferred_element_type=jnp.float32) + vec(pfx + "_bo")
        return layer_norm(x + sa, pfx + "_g1", pfx + "_be1")

    def ffn_block(x, pfx, g, b):
        h = jnp.dot(x, mat(pfx + "_w1"), preferred_element_type=jnp.float32) + vec(pfx + "_b1")
        h = jnp.maximum(h, 0.0)
        f = jnp.dot(h, mat(pfx + "_w2"), preferred_element_type=jnp.float32) + vec(pfx + "_b2")
        return layer_norm(x + f, g, b)

    w_in = vec("w_in")          # (1, D): sqrt(n_feats) * lin.weight (pre-folded)
    pe_b = mat("pe_b")          # (S, D): positional encoding + lin.bias (pre-folded)

    for bi in range(block_b):   # block_b is a trace-time constant (B split over 2 grid steps)
        # ---------------- encoder path ----------------
        x = src_ref[bi].T * w_in + pe_b                 # (S, D): lin(src*sqrt(F)) + PE
        x = self_block(x, "enc")
        mem = ffn_block(x, "enc", "enc_g2", "enc_be2")  # encoder memory stays in vregs

        # ---------------- decoder path ----------------
        y = tgt_ref[bi].T * w_in + pe_b
        y = self_block(y, "dec_sa")                     # unmasked self-attn (torch call passes no tgt_mask)
        # cross-attention: queries from decoder stream, K/V from encoder memory (fused K|V matmul)
        qc = jnp.dot(y, mat("dec_wqc"), preferred_element_type=jnp.float32) + vec("dec_bqc")
        kv = jnp.dot(mem, mat("dec_wkvc"), preferred_element_type=jnp.float32) + vec("dec_bkvc")
        ca = attn(qc, kv[:, 0:D], kv[:, D:2 * D])
        ca = jnp.dot(ca, mat("dec_wo_c"), preferred_element_type=jnp.float32) + vec("dec_bo_c")
        y = layer_norm(y + ca, "dec_g2", "dec_be2")
        y = ffn_block(y, "dec", "dec_g3", "dec_be3")

        # -------- output head: sigmoid(out_lin(y)) stored as a lane-dense (1, S) row --------
        o = jnp.sum(y * vec("w_out"), axis=-1, keepdims=True) + vec("b_out")   # (S, 1)
        out_ref[bi] = jax.nn.sigmoid(o.T)                                      # (1, S)


# ---------------------------------------------------------------------------- params

def sinusoidal_pe(max_len, d_model):
    pos = jnp.arange(max_len, dtype=jnp.float32)[:, None]
    div = jnp.exp(jnp.arange(0, d_model, 2, dtype=jnp.float32) * (-math.log(10000.0) / d_model))
    pe = jnp.zeros((max_len, d_model), jnp.float32)
    pe = pe.at[:, 0::2].set(jnp.sin(pos * div))
    pe = pe.at[:, 1::2].set(jnp.cos(pos * div))
    return pe


def init_params(key, feats, n_window, dim_ff=16):
    """Builds the two weight slabs + metadata.  Random N(0,0.2) stand-ins for torch weights
    (in practice these would be copied from the torch checkpoint)."""
    D, S, FF = feats, n_window, dim_ff
    head_dim = D // feats                       # nhead = feats  => head_dim == 1
    sm_scale = 1.0 / math.sqrt(head_dim)
    ks = iter(jax.random.split(key, 32))

    def nrm(shape, std=0.2):
        return std * jax.random.normal(next(ks), shape, jnp.float32)

    ones, zeros = jnp.ones((D,), jnp.float32), jnp.zeros((D,), jnp.float32)
    b = _SlabBuilder(max_rows=max(D, FF, S), vec_width=max(3 * D, FF, 1))

    # input projection lin: Linear(1, feats); sqrt(n_feats) and lin.bias pre-folded
    lin_w, lin_b = nrm((D, 1)), nrm((D,))
    b.add_vec("w_in", math.sqrt(feats) * lin_w[:, 0])
    b.add_mat("pe_b", sinusoidal_pe(feats * n_window, D)[:S] + lin_b[None, :])

    def add_self_attn(pfx):
        in_w, in_b = nrm((3 * D, D)), nrm((3 * D,))      # PyTorch in_proj layout (3D, D)
        o_w, o_b = nrm((D, D)), nrm((D,))
        wqkv = in_w.T.at[:, :D].multiply(sm_scale)       # x @ wqkv = [q|k|v]; scale folded into Q
        bqkv = in_b.at[:D].multiply(sm_scale)
        b.add_mat(pfx + "_wqkv", wqkv); b.add_vec(pfx + "_bqkv", bqkv)
        b.add_mat(pfx + "_wo", o_w.T);  b.add_vec(pfx + "_bo", o_b)
        b.add_vec(pfx + "_g1", ones);   b.add_vec(pfx + "_be1", zeros)

    def add_ffn(pfx, gname, bname):
        w1, b1 = nrm((FF, D)), nrm((FF,))
        w2, b2 = nrm((D, FF)), nrm((D,))
        b.add_mat(pfx + "_w1", w1.T); b.add_vec(pfx + "_b1", b1)
        b.add_mat(pfx + "_w2", w2.T); b.add_vec(pfx + "_b2", b2)
        b.add_vec(gname, ones);       b.add_vec(bname, zeros)

    # encoder layer
    add_self_attn("enc")
    add_ffn("enc", "enc_g2", "enc_be2")

    # decoder layer: self-attn, cross-attn, ffn
    add_self_attn("dec_sa")
    in_w, in_b = nrm((3 * D, D)), nrm((3 * D,))
    o_w, o_b = nrm((D, D)), nrm((D,))
    b.add_mat("dec_wqc", in_w[:D].T * sm_scale); b.add_vec("dec_bqc", in_b[:D] * sm_scale)
    b.add_mat("dec_wkvc", in_w[D:].T);           b.add_vec("dec_bkvc", in_b[D:])
    b.add_mat("dec_wo_c", o_w.T);                b.add_vec("dec_bo_c", o_b)
    b.add_vec("dec_g2", ones);                   b.add_vec("dec_be2", zeros)
    add_ffn("dec", "dec_g3", "dec_be3")

    # output head out_lin: Linear(feats, 1) + sigmoid
    out_w, out_b = nrm((1, D)), nrm((1,))
    b.add_vec("w_out", out_w[0]); b.add_vec("b_out", out_b)

    mats, vecs = b.build()
    params = {"mats": mats, "vecs": vecs}                       # arrays only (jit-friendly)
    meta = dict(moff=b.mat_off, voff=b.vec_off, D=D, S=S, FF=FF)  # static Python offsets
    return params, meta


# ---------------------------------------------------------------------------- forward wrapper

def make_forward(meta):
    D, S, FF = meta["D"], meta["S"], meta["FF"]
    moff, voff = meta["moff"], meta["voff"]

    def forward(params, src, tgt):
        """Mirrors TransformerBasic.forward (eval mode).  src/tgt: (S, B) -> out: (S, B, 1)."""
        S_in, B = src.shape
        assert S_in == S
        n_steps = 2 if B % 2 == 0 else 1        # exactly 2 parallel steps -> both v7x TCs get work
        block_b = B // n_steps

        src_b = jnp.transpose(src).reshape(B, 1, S)   # lane-dense (B,1,S) rows, no last-dim-1 blocks
        tgt_b = jnp.transpose(tgt).reshape(B, 1, S)

        kernel = functools.partial(_fused_kernel, moff=moff, voff=voff,
                                   D=D, S=S, FF=FF, block_b=block_b)
        out = pl.pallas_call(
            kernel,
            out_shape=jax.ShapeDtypeStruct((B, 1, S), jnp.float32),
            grid=(n_steps,),
            in_specs=[
                pl.BlockSpec((block_b, 1, S), lambda i: (i, 0, 0)),      # src batch slice
                pl.BlockSpec((block_b, 1, S), lambda i: (i, 0, 0)),      # tgt batch slice
                pl.BlockSpec(params["mats"].shape, lambda i: (0, 0)),    # matrix slab (constant)
                pl.BlockSpec(params["vecs"].shape, lambda i: (0, 0)),    # vector slab (constant)
            ],
            out_specs=pl.BlockSpec((block_b, 1, S), lambda i: (i, 0, 0)),
            compiler_params=pltpu.CompilerParams(dimension_semantics=("parallel",)),
        )(src_b, tgt_b, params["mats"], params["vecs"])

        return jnp.transpose(out, (2, 0, 1))    # (S, B, 1), seq-first like torch

    return forward


# ---------------------------------------------------------------------------- main

if __name__ == "__main__":
    feats = 4         # n_feats -> d_model = nhead = 4 (head_dim = 1), dim_feedforward = 16
    n_window = 10     # TransformerBasic.n_window (sequence length)
    batch = 2

    key = jax.random.PRNGKey(0)
    kp, ksrc, ktgt = jax.random.split(key, 3)
    params, meta = init_params(kp, feats, n_window)

    src = jax.random.uniform(ksrc, (n_window, batch), jnp.float32)   # (S, B) scalar series
    tgt = jax.random.uniform(ktgt, (n_window, batch), jnp.float32)

    fwd = jax.jit(make_forward(meta))
    out = jax.block_until_ready(fwd(params, src, tgt))

    assert out.shape == (n_window, batch, 1)
    assert bool(jnp.all(jnp.isfinite(out)))
    assert bool(jnp.all((out >= 0.0) & (out <= 1.0)))   # sigmoid output range
    print("KERNEL_OK")
</pallas_src>

<mosaic_0001>
module attributes {stable_mosaic.version = 11 : i64} {
  func.func @_fused_kernel(%arg0: i32, %arg1: memref<1x1x10xf32, #tpu.memory_space<vmem>>, %arg2: memref<1x1x10xf32, #tpu.memory_space<vmem>>, %arg3: memref<16x92xf32, #tpu.memory_space<vmem>>, %arg4: memref<24x16xf32, #tpu.memory_space<vmem>>, %arg5: memref<1x1x10xf32, #tpu.memory_space<vmem>>) attributes {dimension_semantics = [#tpu.dimension_semantics<parallel>], iteration_bounds = array<i64: 2>, scalar_prefetch = 0 : i64, scratch_operands = 0 : i64, tpu.core_type = #tpu.core_type<tc>, window_params = [{transform_indices = @transform_0, window_bounds = array<i64: 1, 1, 10>}, {transform_indices = @transform_1, window_bounds = array<i64: 1, 1, 10>}, {pipeline_mode = #tpu.pipeline_mode<synchronous>, transform_indices = @transform_2, window_bounds = array<i64: 16, 92>}, {pipeline_mode = #tpu.pipeline_mode<synchronous>, transform_indices = @transform_3, window_bounds = array<i64: 24, 16>}, {transform_indices = @transform_4, window_bounds = array<i64: 1, 1, 10>}]} {
    %c0 = arith.constant 0 : index
    %c0_0 = arith.constant 0 : index
    %0 = vector.load %arg4[%c0, %c0_0] : memref<24x16xf32, #tpu.memory_space<vmem>>, vector<1x4xf32>
    %c0_1 = arith.constant 0 : index
    %c0_2 = arith.constant 0 : index
    %1 = vector.load %arg3[%c0_1, %c0_2] : memref<16x92xf32, #tpu.memory_space<vmem>>, vector<10x4xf32>
    %c0_3 = arith.constant 0 : index
    %c0_4 = arith.constant 0 : index
    %c0_5 = arith.constant 0 : index
    %2 = vector.load %arg1[%c0_3, %c0_4, %c0_5] : memref<1x1x10xf32, #tpu.memory_space<vmem>>, vector<1x1x10xf32>
    %3 = vector.shape_cast %2 : vector<1x1x10xf32> to vector<1x10xf32>
    %4 = tpu.transpose %3, [1, 0] : vector<1x10xf32> -> vector<10x1xf32>
    %5 = vector.broadcast %4 : vector<10x1xf32> to vector<10x4xf32>
    %6 = vector.broadcast %0 : vector<1x4xf32> to vector<10x4xf32>
    %7 = arith.mulf %5, %6 : vector<10x4xf32>
    %8 = arith.addf %7, %1 : vector<10x4xf32>
    %c0_6 = arith.constant 0 : index
    %c4 = arith.constant 4 : index
    %9 = vector.load %arg3[%c0_6, %c4] : memref<16x92xf32, #tpu.memory_space<vmem>>, vector<4x12xf32>
    %cst = arith.constant dense<0.000000e+00> : vector<10x12xf32>
    %10 = tpu.matmul %8, %9, %cst {dimension_numbers = #tpu.dot_dimension_numbers<[1], [0], [0], [1], [0, 0, 1, 1], [], []>} : vector<10x4xf32>, vector<4x12xf32>, vector<10x12xf32> -> vector<10x12xf32>
    %c1 = arith.constant 1 : index
    %c0_7 = arith.constant 0 : index
    %11 = vector.load %arg4[%c1, %c0_7] : memref<24x16xf32, #tpu.memory_space<vmem>>, vector<1x12xf32>
    %12 = vector.broadcast %11 : vector<1x12xf32> to vector<10x12xf32>
    %13 = arith.addf %10, %12 : vector<10x12xf32>
    %14 = vector.extract_strided_slice %13 {offsets = [0, 0], sizes = [10, 4], strides = [1, 1]} : vector<10x12xf32> to vector<10x4xf32>
    %15 = vector.extract_strided_slice %13 {offsets = [0, 4], sizes = [10, 4], strides = [1, 1]} : vector<10x12xf32> to vector<10x4xf32>
    %16 = vector.extract_strided_slice %13 {offsets = [0, 8], sizes = [10, 4], strides = [1, 1]} : vector<10x12xf32> to vector<10x4xf32>
    %17 = tpu.transpose %14, [1, 0] : vector<10x4xf32> -> vector<4x10xf32>
    %18 = tpu.transpose %15, [1, 0] : vector<10x4xf32> -> vector<4x10xf32>
    %19 = tpu.transpose %16, [1, 0] : vector<10x4xf32> -> vector<4x10xf32>
    %20 = vector.shape_cast %17 : vector<4x10xf32> to vector<4x10x1xf32>
    %21 = vector.shape_cast %18 : vector<4x10xf32> to vector<4x1x10xf32>
    %22 = vector.broadcast %20 : vector<4x10x1xf32> to vector<4x10x10xf32>
    %23 = vector.broadcast %21 : vector<4x1x10xf32> to vector<4x10x10xf32>
    %24 = arith.mulf %22, %23 : vector<4x10x10xf32>
    %cst_8 = arith.constant dense<0xFF800000> : vector<4x10xf32>
    %25 = vector.multi_reduction <maximumf>, %24, %cst_8 [2] : vector<4x10x10xf32> to vector<4x10xf32>
    %26 = vector.shape_cast %25 : vector<4x10xf32> to vector<4x10x1xf32>
    %27 = vector.broadcast %26 : vector<4x10x1xf32> to vector<4x10x10xf32>
    %28 = arith.subf %24, %27 : vector<4x10x10xf32>
    %29 = math.exp %28 : vector<4x10x10xf32>
    %cst_9 = arith.constant dense<0.000000e+00> : vector<4x10xf32>
    %30 = vector.multi_reduction <add>, %29, %cst_9 [2] : vector<4x10x10xf32> to vector<4x10xf32>
    %31 = vector.shape_cast %30 : vector<4x10xf32> to vector<4x10x1xf32>
    %32 = vector.broadcast %31 : vector<4x10x1xf32> to vector<4x10x10xf32>
    %33 = arith.divf %29, %32 : vector<4x10x10xf32>
    %34 = vector.shape_cast %19 : vector<4x10xf32> to vector<4x1x10xf32>
    %35 = vector.broadcast %34 : vector<4x1x10xf32> to vector<4x10x10xf32>
    %36 = arith.mulf %33, %35 : vector<4x10x10xf32>
    %cst_10 = arith.constant dense<0.000000e+00> : vector<4x10xf32>
    %37 = vector.multi_reduction <add>, %36, %cst_10 [2] : vector<4x10x10xf32> to vector<4x10xf32>
    %38 = tpu.transpose %37, [1, 0] : vector<4x10xf32> -> vector<10x4xf32>
    %c0_11 = arith.constant 0 : index
    %c16 = arith.constant 16 : index
    %39 = vector.load %arg3[%c0_11, %c16] : memref<16x92xf32, #tpu.memory_space<vmem>>, vector<4x4xf32>
    %cst_12 = arith.constant dense<0.000000e+00> : vector<10x4xf32>
    %40 = tpu.matmul %38, %39, %cst_12 {dimension_numbers = #tpu.dot_dimension_numbers<[1], [0], [0], [1], [0, 0, 1, 1], [], []>} : vector<10x4xf32>, vector<4x4xf32>, vector<10x4xf32> -> vector<10x4xf32>
    %c2 = arith.constant 2 : index
    %c0_13 = arith.constant 0 : index
    %41 = vector.load %arg4[%c2, %c0_13] : memref<24x16xf32, #tpu.memory_space<vmem>>, vector<1x4xf32>
    %42 = vector.broadcast %41 : vector<1x4xf32> to vector<10x4xf32>
    %43 = arith.addf %40, %42 : vector<10x4xf32>
    %44 = arith.addf %8, %43 : vector<10x4xf32>
    %cst_14 = arith.constant dense<0.000000e+00> : vector<10xf32>
    %45 = vector.multi_reduction <add>, %44, %cst_14 [1] : vector<10x4xf32> to vector<10xf32>
    %46 = vector.shape_cast %45 : vector<10xf32> to vector<10x1xf32>
    %cst_15 = arith.constant 4.000000e+00 : f32
    %47 = vector.broadcast %cst_15 : f32 to vector<10x1xf32>
    %48 = arith.divf %46, %47 : vector<10x1xf32>
    %49 = vector.broadcast %48 : vector<10x1xf32> to vector<10x4xf32>
    %50 = arith.subf %44, %49 : vector<10x4xf32>
    %51 = arith.mulf %50, %50 : vector<10x4xf32>
    %cst_16 = arith.constant dense<0.000000e+00> : vector<10xf32>
    %52 = vector.multi_reduction <add>, %51, %cst_16 [1] : vector<10x4xf32> to vector<10xf32>
    %53 = vector.shape_cast %52 : vector<10xf32> to vector<10x1xf32>
    %cst_17 = arith.constant 4.000000e+00 : f32
    %54 = vector.broadcast %cst_17 : f32 to vector<10x1xf32>
    %55 = arith.divf %53, %54 : vector<10x1xf32>
    %cst_18 = arith.constant 9.99999974E-6 : f32
    %56 = vector.broadcast %cst_18 : f32 to vector<10x1xf32>
    %57 = arith.addf %55, %56 : vector<10x1xf32>
    %58 = math.rsqrt %57 : vector<10x1xf32>
    %59 = vector.broadcast %58 : vector<10x1xf32> to vector<10x4xf32>
    %60 = arith.mulf %50, %59 : vector<10x4xf32>
    %c3 = arith.constant 3 : index
    %c0_19 = arith.constant 0 : index
    %61 = vector.load %arg4[%c3, %c0_19] : memref<24x16xf32, #tpu.memory_space<vmem>>, vector<1x4xf32>
    %62 = vector.broadcast %61 : vector<1x4xf32> to vector<10x4xf32>
    %63 = arith.mulf %60, %62 : vector<10x4xf32>
    %c4_20 = arith.constant 4 : index
    %c0_21 = arith.constant 0 : index
    %64 = vector.load %arg4[%c4_20, %c0_21] : memref<24x16xf32, #tpu.memory_space<vmem>>, vector<1x4xf32>
    %65 = vector.broadcast %64 : vector<1x4xf32> to vector<10x4xf32>
    %66 = arith.addf %63, %65 : vector<10x4xf32>
    %c0_22 = arith.constant 0 : index
    %c20 = arith.constant 20 : index
    %67 = vector.load %arg3[%c0_22, %c20] : memref<16x92xf32, #tpu.memory_space<vmem>>, vector<4x16xf32>
    %cst_23 = arith.constant dense<0.000000e+00> : vector<10x16xf32>
    %68 = tpu.matmul %66, %67, %cst_23 {dimension_numbers = #tpu.dot_dimension_numbers<[1], [0], [0], [1], [0, 0, 1, 1], [], []>} : vector<10x4xf32>, vector<4x16xf32>, vector<10x16xf32> -> vector<10x16xf32>
    %c5 = arith.constant 5 : index
    %c0_24 = arith.constant 0 : index
    %69 = vector.load %arg4[%c5, %c0_24] : memref<24x16xf32, #tpu.memory_space<vmem>>, vector<1x16xf32>
    %70 = vector.broadcast %69 : vector<1x16xf32> to vector<10x16xf32>
    %71 = arith.addf %68, %70 : vector<10x16xf32>
    %cst_25 = arith.constant 0.000000e+00 : f32
    %72 = vector.broadcast %cst_25 : f32 to vector<10x16xf32>
    %73 = arith.maximumf %71, %72 : vector<10x16xf32>
    %c0_26 = arith.constant 0 : index
    %c36 = arith.constant 36 : index
    %74 = vector.load %arg3[%c0_26, %c36] : memref<16x92xf32, #tpu.memory_space<vmem>>, vector<16x4xf32>
    %cst_27 = arith.constant dense<0.000000e+00> : vector<10x4xf32>
    %75 = tpu.matmul %73, %74, %cst_27 {dimension_numbers = #tpu.dot_dimension_numbers<[1], [0], [0], [1], [0, 0, 1, 1], [], []>} : vector<10x16xf32>, vector<16x4xf32>, vector<10x4xf32> -> vector<10x4xf32>
    %c6 = arith.constant 6 : index
    %c0_28 = arith.constant 0 : index
    %76 = vector.load %arg4[%c6, %c0_28] : memref<24x16xf32, #tpu.memory_space<vmem>>, vector<1x4xf32>
    %77 = vector.broadcast %76 : vector<1x4xf32> to vector<10x4xf32>
    %78 = arith.addf %75, %77 : vector<10x4xf32>
    %79 = arith.addf %66, %78 : vector<10x4xf32>
    %cst_29 = arith.constant dense<0.000000e+00> : vector<10xf32>
    %80 = vector.multi_reduction <add>, %79, %cst_29 [1] : vector<10x4xf32> to vector<10xf32>
    %81 = vector.shape_cast %80 : vector<10xf32> to vector<10x1xf32>
    %cst_30 = arith.constant 4.000000e+00 : f32
    %82 = vector.broadcast %cst_30 : f32 to vector<10x1xf32>
    %83 = arith.divf %81, %82 : vector<10x1xf32>
    %84 = vector.broadcast %83 : vector<10x1xf32> to vector<10x4xf32>
    %85 = arith.subf %79, %84 : vector<10x4xf32>
    %86 = arith.mulf %85, %85 : vector<10x4xf32>
    %cst_31 = arith.constant dense<0.000000e+00> : vector<10xf32>
    %87 = vector.multi_reduction <add>, %86, %cst_31 [1] : vector<10x4xf32> to vector<10xf32>
    %88 = vector.shape_cast %87 : vector<10xf32> to vector<10x1xf32>
    %cst_32 = arith.constant 4.000000e+00 : f32
    %89 = vector.broadcast %cst_32 : f32 to vector<10x1xf32>
    %90 = arith.divf %88, %89 : vector<10x1xf32>
    %cst_33 = arith.constant 9.99999974E-6 : f32
    %91 = vector.broadcast %cst_33 : f32 to vector<10x1xf32>
    %92 = arith.addf %90, %91 : vector<10x1xf32>
    %93 = math.rsqrt %92 : vector<10x1xf32>
    %94 = vector.broadcast %93 : vector<10x1xf32> to vector<10x4xf32>
    %95 = arith.mulf %85, %94 : vector<10x4xf32>
    %c7 = arith.constant 7 : index
    %c0_34 = arith.constant 0 : index
    %96 = vector.load %arg4[%c7, %c0_34] : memref<24x16xf32, #tpu.memory_space<vmem>>, vector<1x4xf32>
    %97 = vector.broadcast %96 : vector<1x4xf32> to vector<10x4xf32>
    %98 = arith.mulf %95, %97 : vector<10x4xf32>
    %c8 = arith.constant 8 : index
    %c0_35 = arith.constant 0 : index
    %99 = vector.load %arg4[%c8, %c0_35] : memref<24x16xf32, #tpu.memory_space<vmem>>, vector<1x4xf32>
    %100 = vector.broadcast %99 : vector<1x4xf32> to vector<10x4xf32>
    %101 = arith.addf %98, %100 : vector<10x4xf32>
    %c0_36 = arith.constant 0 : index
    %c0_37 = arith.constant 0 : index
    %c0_38 = arith.constant 0 : index
    %102 = vector.load %arg2[%c0_36, %c0_37, %c0_38] : memref<1x1x10xf32, #tpu.memory_space<vmem>>, vector<1x1x10xf32>
    %103 = vector.shape_cast %102 : vector<1x1x10xf32> to vector<1x10xf32>
    %104 = tpu.transpose %103, [1, 0] : vector<1x10xf32> -> vector<10x1xf32>
    %105 = vector.broadcast %104 : vector<10x1xf32> to vector<10x4xf32>
    %106 = vector.broadcast %0 : vector<1x4xf32> to vector<10x4xf32>
    %107 = arith.mulf %105, %106 : vector<10x4xf32>
    %108 = arith.addf %107, %1 : vector<10x4xf32>
    %c0_39 = arith.constant 0 : index
    %c40 = arith.constant 40 : index
    %109 = vector.load %arg3[%c0_39, %c40] : memref<16x92xf32, #tpu.memory_space<vmem>>, vector<4x12xf32>
    %cst_40 = arith.constant dense<0.000000e+00> : vector<10x12xf32>
    %110 = tpu.matmul %108, %109, %cst_40 {dimension_numbers = #tpu.dot_dimension_numbers<[1], [0], [0], [1], [0, 0, 1, 1], [], []>} : vector<10x4xf32>, vector<4x12xf32>, vector<10x12xf32> -> vector<10x12xf32>
    %c9 = arith.constant 9 : index
    %c0_41 = arith.constant 0 : index
    %111 = vector.load %arg4[%c9, %c0_41] : memref<24x16xf32, #tpu.memory_space<vmem>>, vector<1x12xf32>
    %112 = vector.broadcast %111 : vector<1x12xf32> to vector<10x12xf32>
    %113 = arith.addf %110, %112 : vector<10x12xf32>
    %114 = vector.extract_strided_slice %113 {offsets = [0, 0], sizes = [10, 4], strides = [1, 1]} : vector<10x12xf32> to vector<10x4xf32>
    %115 = vector.extract_strided_slice %113 {offsets = [0, 4], sizes = [10, 4], strides = [1, 1]} : vector<10x12xf32> to vector<10x4xf32>
    %116 = vector.extract_strided_slice %113 {offsets = [0, 8], sizes = [10, 4], strides = [1, 1]} : vector<10x12xf32> to vector<10x4xf32>
    %117 = tpu.transpose %114, [1, 0] : vector<10x4xf32> -> vector<4x10xf32>
    %118 = tpu.transpose %115, [1, 0] : vector<10x4xf32> -> vector<4x10xf32>
    %119 = tpu.transpose %116, [1, 0] : vector<10x4xf32> -> vector<4x10xf32>
    %120 = vector.shape_cast %117 : vector<4x10xf32> to vector<4x10x1xf32>
    %121 = vector.shape_cast %118 : vector<4x10xf32> to vector<4x1x10xf32>
    %122 = vector.broadcast %120 : vector<4x10x1xf32> to vector<4x10x10xf32>
    %123 = vector.broadcast %121 : vector<4x1x10xf32> to vector<4x10x10xf32>
    %124 = arith.mulf %122, %123 : vector<4x10x10xf32>
    %cst_42 = arith.constant dense<0xFF800000> : vector<4x10xf32>
    %125 = vector.multi_reduction <maximumf>, %124, %cst_42 [2] : vector<4x10x10xf32> to vector<4x10xf32>
    %126 = vector.shape_cast %125 : vector<4x10xf32> to vector<4x10x1xf32>
    %127 = vector.broadcast %126 : vector<4x10x1xf32> to vector<4x10x10xf32>
    %128 = arith.subf %124, %127 : vector<4x10x10xf32>
    %129 = math.exp %128 : vector<4x10x10xf32>
    %cst_43 = arith.constant dense<0.000000e+00> : vector<4x10xf32>
    %130 = vector.multi_reduction <add>, %129, %cst_43 [2] : vector<4x10x10xf32> to vector<4x10xf32>
    %131 = vector.shape_cast %130 : vector<4x10xf32> to vector<4x10x1xf32>
    %132 = vector.broadcast %131 : vector<4x10x1xf32> to vector<4x10x10xf32>
    %133 = arith.divf %129, %132 : vector<4x10x10xf32>
    %134 = vector.shape_cast %119 : vector<4x10xf32> to vector<4x1x10xf32>
    %135 = vector.broadcast %134 : vector<4x1x10xf32> to vector<4x10x10xf32>
    %136 = arith.mulf %133, %135 : vector<4x10x10xf32>
    %cst_44 = arith.constant dense<0.000000e+00> : vector<4x10xf32>
    %137 = vector.multi_reduction <add>, %136, %cst_44 [2] : vector<4x10x10xf32> to vector<4x10xf32>
    %138 = tpu.transpose %137, [1, 0] : vector<4x10xf32> -> vector<10x4xf32>
    %c0_45 = arith.constant 0 : index
    %c52 = arith.constant 52 : index
    %139 = vector.load %arg3[%c0_45, %c52] : memref<16x92xf32, #tpu.memory_space<vmem>>, vector<4x4xf32>
    %cst_46 = arith.constant dense<0.000000e+00> : vector<10x4xf32>
    %140 = tpu.matmul %138, %139, %cst_46 {dimension_numbers = #tpu.dot_dimension_numbers<[1], [0], [0], [1], [0, 0, 1, 1], [], []>} : vector<10x4xf32>, vector<4x4xf32>, vector<10x4xf32> -> vector<10x4xf32>
    %c10 = arith.constant 10 : index
    %c0_47 = arith.constant 0 : index
    %141 = vector.load %arg4[%c10, %c0_47] : memref<24x16xf32, #tpu.memory_space<vmem>>, vector<1x4xf32>
    %142 = vector.broadcast %141 : vector<1x4xf32> to vector<10x4xf32>
    %143 = arith.addf %140, %142 : vector<10x4xf32>
    %144 = arith.addf %108, %143 : vector<10x4xf32>
    %cst_48 = arith.constant dense<0.000000e+00> : vector<10xf32>
    %145 = vector.multi_reduction <add>, %144, %cst_48 [1] : vector<10x4xf32> to vector<10xf32>
    %146 = vector.shape_cast %145 : vector<10xf32> to vector<10x1xf32>
    %cst_49 = arith.constant 4.000000e+00 : f32
    %147 = vector.broadcast %cst_49 : f32 to vector<10x1xf32>
    %148 = arith.divf %146, %147 : vector<10x1xf32>
    %149 = vector.broadcast %148 : vector<10x1xf32> to vector<10x4xf32>
    %150 = arith.subf %144, %149 : vector<10x4xf32>
    %151 = arith.mulf %150, %150 : vector<10x4xf32>
    %cst_50 = arith.constant dense<0.000000e+00> : vector<10xf32>
    %152 = vector.multi_reduction <add>, %151, %cst_50 [1] : vector<10x4xf32> to vector<10xf32>
    %153 = vector.shape_cast %152 : vector<10xf32> to vector<10x1xf32>
    %cst_51 = arith.constant 4.000000e+00 : f32
    %154 = vector.broadcast %cst_51 : f32 to vector<10x1xf32>
    %155 = arith.divf %153, %154 : vector<10x1xf32>
    %cst_52 = arith.constant 9.99999974E-6 : f32
    %156 = vector.broadcast %cst_52 : f32 to vector<10x1xf32>
    %157 = arith.addf %155, %156 : vector<10x1xf32>
    %158 = math.rsqrt %157 : vector<10x1xf32>
    %159 = vector.broadcast %158 : vector<10x1xf32> to vector<10x4xf32>
    %160 = arith.mulf %150, %159 : vector<10x4xf32>
    %c11 = arith.constant 11 : index
    %c0_53 = arith.constant 0 : index
    %161 = vector.load %arg4[%c11, %c0_53] : memref<24x16xf32, #tpu.memory_space<vmem>>, vector<1x4xf32>
    %162 = vector.broadcast %161 : vector<1x4xf32> to vector<10x4xf32>
    %163 = arith.mulf %160, %162 : vector<10x4xf32>
    %c12 = arith.constant 12 : index
    %c0_54 = arith.constant 0 : index
    %164 = vector.load %arg4[%c12, %c0_54] : memref<24x16xf32, #tpu.memory_space<vmem>>, vector<1x4xf32>
    %165 = vector.broadcast %164 : vector<1x4xf32> to vector<10x4xf32>
    %166 = arith.addf %163, %165 : vector<10x4xf32>
    %c0_55 = arith.constant 0 : index
    %c56 = arith.constant 56 : index
    %167 = vector.load %arg3[%c0_55, %c56] : memref<16x92xf32, #tpu.memory_space<vmem>>, vector<4x4xf32>
    %cst_56 = arith.constant dense<0.000000e+00> : vector<10x4xf32>
    %168 = tpu.matmul %166, %167, %cst_56 {dimension_numbers = #tpu.dot_dimension_numbers<[1], [0], [0], [1], [0, 0, 1, 1], [], []>} : vector<10x4xf32>, vector<4x4xf32>, vector<10x4xf32> -> vector<10x4xf32>
    %c13 = arith.constant 13 : index
    %c0_57 = arith.constant 0 : index
    %169 = vector.load %arg4[%c13, %c0_57] : memref<24x16xf32, #tpu.memory_space<vmem>>, vector<1x4xf32>
    %170 = vector.broadcast %169 : vector<1x4xf32> to vector<10x4xf32>
    %171 = arith.addf %168, %170 : vector<10x4xf32>
    %c0_58 = arith.constant 0 : index
    %c60 = arith.constant 60 : index
    %172 = vector.load %arg3[%c0_58, %c60] : memref<16x92xf32, #tpu.memory_space<vmem>>, vector<4x8xf32>
    %cst_59 = arith.constant dense<0.000000e+00> : vector<10x8xf32>
    %173 = tpu.matmul %101, %172, %cst_59 {dimension_numbers = #tpu.dot_dimension_numbers<[1], [0], [0], [1], [0, 0, 1, 1], [], []>} : vector<10x4xf32>, vector<4x8xf32>, vector<10x8xf32> -> vector<10x8xf32>
    %c14 = arith.constant 14 : index
    %c0_60 = arith.constant 0 : index
    %174 = vector.load %arg4[%c14, %c0_60] : memref<24x16xf32, #tpu.memory_space<vmem>>, vector<1x8xf32>
    %175 = vector.broadcast %174 : vector<1x8xf32> to vector<10x8xf32>
    %176 = arith.addf %173, %175 : vector<10x8xf32>
    %177 = vector.extract_strided_slice %176 {offsets = [0, 0], sizes = [10, 4], strides = [1, 1]} : vector<10x8xf32> to vector<10x4xf32>
    %178 = vector.extract_strided_slice %176 {offsets = [0, 4], sizes = [10, 4], strides = [1, 1]} : vector<10x8xf32> to vector<10x4xf32>
    %179 = tpu.transpose %171, [1, 0] : vector<10x4xf32> -> vector<4x10xf32>
    %180 = tpu.transpose %177, [1, 0] : vector<10x4xf32> -> vector<4x10xf32>
    %181 = tpu.transpose %178, [1, 0] : vector<10x4xf32> -> vector<4x10xf32>
    %182 = vector.shape_cast %179 : vector<4x10xf32> to vector<4x10x1xf32>
    %183 = vector.shape_cast %180 : vector<4x10xf32> to vector<4x1x10xf32>
    %184 = vector.broadcast %182 : vector<4x10x1xf32> to vector<4x10x10xf32>
    %185 = vector.broadcast %183 : vector<4x1x10xf32> to vector<4x10x10xf32>
    %186 = arith.mulf %184, %185 : vector<4x10x10xf32>
    %cst_61 = arith.constant dense<0xFF800000> : vector<4x10xf32>
    %187 = vector.multi_reduction <maximumf>, %186, %cst_61 [2] : vector<4x10x10xf32> to vector<4x10xf32>
    %188 = vector.shape_cast %187 : vector<4x10xf32> to vector<4x10x1xf32>
    %189 = vector.broadcast %188 : vector<4x10x1xf32> to vector<4x10x10xf32>
    %190 = arith.subf %186, %189 : vector<4x10x10xf32>
    %191 = math.exp %190 : vector<4x10x10xf32>
    %cst_62 = arith.constant dense<0.000000e+00> : vector<4x10xf32>
    %192 = vector.multi_reduction <add>, %191, %cst_62 [2] : vector<4x10x10xf32> to vector<4x10xf32>
    %193 = vector.shape_cast %192 : vector<4x10xf32> to vector<4x10x1xf32>
    %194 = vector.broadcast %193 : vector<4x10x1xf32> to vector<4x10x10xf32>
    %195 = arith.divf %191, %194 : vector<4x10x10xf32>
    %196 = vector.shape_cast %181 : vector<4x10xf32> to vector<4x1x10xf32>
    %197 = vector.broadcast %196 : vector<4x1x10xf32> to vector<4x10x10xf32>
    %198 = arith.mulf %195, %197 : vector<4x10x10xf32>
    %cst_63 = arith.constant dense<0.000000e+00> : vector<4x10xf32>
    %199 = vector.multi_reduction <add>, %198, %cst_63 [2] : vector<4x10x10xf32> to vector<4x10xf32>
    %200 = tpu.transpose %199, [1, 0] : vector<4x10xf32> -> vector<10x4xf32>
    %c0_64 = arith.constant 0 : index
    %c68 = arith.constant 68 : index
    %201 = vector.load %arg3[%c0_64, %c68] : memref<16x92xf32, #tpu.memory_space<vmem>>, vector<4x4xf32>
    %cst_65 = arith.constant dense<0.000000e+00> : vector<10x4xf32>
    %202 = tpu.matmul %200, %201, %cst_65 {dimension_numbers = #tpu.dot_dimension_numbers<[1], [0], [0], [1], [0, 0, 1, 1], [], []>} : vector<10x4xf32>, vector<4x4xf32>, vector<10x4xf32> -> vector<10x4xf32>
    %c15 = arith.constant 15 : index
    %c0_66 = arith.constant 0 : index
    %203 = vector.load %arg4[%c15, %c0_66] : memref<24x16xf32, #tpu.memory_space<vmem>>, vector<1x4xf32>
    %204 = vector.broadcast %203 : vector<1x4xf32> to vector<10x4xf32>
    %205 = arith.addf %202, %204 : vector<10x4xf32>
    %206 = arith.addf %166, %205 : vector<10x4xf32>
    %cst_67 = arith.constant dense<0.000000e+00> : vector<10xf32>
    %207 = vector.multi_reduction <add>, %206, %cst_67 [1] : vector<10x4xf32> to vector<10xf32>
    %208 = vector.shape_cast %207 : vector<10xf32> to vector<10x1xf32>
    %cst_68 = arith.constant 4.000000e+00 : f32
    %209 = vector.broadcast %cst_68 : f32 to vector<10x1xf32>
    %210 = arith.divf %208, %209 : vector<10x1xf32>
    %211 = vector.broadcast %210 : vector<10x1xf32> to vector<10x4xf32>
    %212 = arith.subf %206, %211 : vector<10x4xf32>
    %213 = arith.mulf %212, %212 : vector<10x4xf32>
    %cst_69 = arith.constant dense<0.000000e+00> : vector<10xf32>
    %214 = vector.multi_reduction <add>, %213, %cst_69 [1] : vector<10x4xf32> to vector<10xf32>
    %215 = vector.shape_cast %214 : vector<10xf32> to vector<10x1xf32>
    %cst_70 = arith.constant 4.000000e+00 : f32
    %216 = vector.broadcast %cst_70 : f32 to vector<10x1xf32>
    %217 = arith.divf %215, %216 : vector<10x1xf32>
    %cst_71 = arith.constant 9.99999974E-6 : f32
    %218 = vector.broadcast %cst_71 : f32 to vector<10x1xf32>
    %219 = arith.addf %217, %218 : vector<10x1xf32>
    %220 = math.rsqrt %219 : vector<10x1xf32>
    %221 = vector.broadcast %220 : vector<10x1xf32> to vector<10x4xf32>
    %222 = arith.mulf %212, %221 : vector<10x4xf32>
    %c16_72 = arith.constant 16 : index
    %c0_73 = arith.constant 0 : index
    %223 = vector.load %arg4[%c16_72, %c0_73] : memref<24x16xf32, #tpu.memory_space<vmem>>, vector<1x4xf32>
    %224 = vector.broadcast %223 : vector<1x4xf32> to vector<10x4xf32>
    %225 = arith.mulf %222, %224 : vector<10x4xf32>
    %c17 = arith.constant 17 : index
    %c0_74 = arith.constant 0 : index
    %226 = vector.load %arg4[%c17, %c0_74] : memref<24x16xf32, #tpu.memory_space<vmem>>, vector<1x4xf32>
    %227 = vector.broadcast %226 : vector<1x4xf32> to vector<10x4xf32>
    %228 = arith.addf %225, %227 : vector<10x4xf32>
    %c0_75 = arith.constant 0 : index
    %c72 = arith.constant 72 : index
    %229 = vector.load %arg3[%c0_75, %c72] : memref<16x92xf32, #tpu.memory_space<vmem>>, vector<4x16xf32>
    %cst_76 = arith.constant dense<0.000000e+00> : vector<10x16xf32>
    %230 = tpu.matmul %228, %229, %cst_76 {dimension_numbers = #tpu.dot_dimension_numbers<[1], [0], [0], [1], [0, 0, 1, 1], [], []>} : vector<10x4xf32>, vector<4x16xf32>, vector<10x16xf32> -> vector<10x16xf32>
    %c18 = arith.constant 18 : index
    %c0_77 = arith.constant 0 : index
    %231 = vector.load %arg4[%c18, %c0_77] : memref<24x16xf32, #tpu.memory_space<vmem>>, vector<1x16xf32>
    %232 = vector.broadcast %231 : vector<1x16xf32> to vector<10x16xf32>
    %233 = arith.addf %230, %232 : vector<10x16xf32>
    %cst_78 = arith.constant 0.000000e+00 : f32
    %234 = vector.broadcast %cst_78 : f32 to vector<10x16xf32>
    %235 = arith.maximumf %233, %234 : vector<10x16xf32>
    %c0_79 = arith.constant 0 : index
    %c88 = arith.constant 88 : index
    %236 = vector.load %arg3[%c0_79, %c88] : memref<16x92xf32, #tpu.memory_space<vmem>>, vector<16x4xf32>
    %cst_80 = arith.constant dense<0.000000e+00> : vector<10x4xf32>
    %237 = tpu.matmul %235, %236, %cst_80 {dimension_numbers = #tpu.dot_dimension_numbers<[1], [0], [0], [1], [0, 0, 1, 1], [], []>} : vector<10x16xf32>, vector<16x4xf32>, vector<10x4xf32> -> vector<10x4xf32>
    %c19 = arith.constant 19 : index
    %c0_81 = arith.constant 0 : index
    %238 = vector.load %arg4[%c19, %c0_81] : memref<24x16xf32, #tpu.memory_space<vmem>>, vector<1x4xf32>
    %239 = vector.broadcast %238 : vector<1x4xf32> to vector<10x4xf32>
    %240 = arith.addf %237, %239 : vector<10x4xf32>
    %241 = arith.addf %228, %240 : vector<10x4xf32>
    %cst_82 = arith.constant dense<0.000000e+00> : vector<10xf32>
    %242 = vector.multi_reduction <add>, %241, %cst_82 [1] : vector<10x4xf32> to vector<10xf32>
    %243 = vector.shape_cast %242 : vector<10xf32> to vector<10x1xf32>
    %cst_83 = arith.constant 4.000000e+00 : f32
    %244 = vector.broadcast %cst_83 : f32 to vector<10x1xf32>
    %245 = arith.divf %243, %244 : vector<10x1xf32>
    %246 = vector.broadcast %245 : vector<10x1xf32> to vector<10x4xf32>
    %247 = arith.subf %241, %246 : vector<10x4xf32>
    %248 = arith.mulf %247, %247 : vector<10x4xf32>
    %cst_84 = arith.constant dense<0.000000e+00> : vector<10xf32>
    %249 = vector.multi_reduction <add>, %248, %cst_84 [1] : vector<10x4xf32> to vector<10xf32>
    %250 = vector.shape_cast %249 : vector<10xf32> to vector<10x1xf32>
    %cst_85 = arith.constant 4.000000e+00 : f32
    %251 = vector.broadcast %cst_85 : f32 to vector<10x1xf32>
    %252 = arith.divf %250, %251 : vector<10x1xf32>
    %cst_86 = arith.constant 9.99999974E-6 : f32
    %253 = vector.broadcast %cst_86 : f32 to vector<10x1xf32>
    %254 = arith.addf %252, %253 : vector<10x1xf32>
    %255 = math.rsqrt %254 : vector<10x1xf32>
    %256 = vector.broadcast %255 : vector<10x1xf32> to vector<10x4xf32>
    %257 = arith.mulf %247, %256 : vector<10x4xf32>
    %c20_87 = arith.constant 20 : index
    %c0_88 = arith.constant 0 : index
    %258 = vector.load %arg4[%c20_87, %c0_88] : memref<24x16xf32, #tpu.memory_space<vmem>>, vector<1x4xf32>
    %259 = vector.broadcast %258 : vector<1x4xf32> to vector<10x4xf32>
    %260 = arith.mulf %257, %259 : vector<10x4xf32>
    %c21 = arith.constant 21 : index
    %c0_89 = arith.constant 0 : index
    %261 = vector.load %arg4[%c21, %c0_89] : memref<24x16xf32, #tpu.memory_space<vmem>>, vector<1x4xf32>
    %262 = vector.broadcast %261 : vector<1x4xf32> to vector<10x4xf32>
    %263 = arith.addf %260, %262 : vector<10x4xf32>
    %c22 = arith.constant 22 : index
    %c0_90 = arith.constant 0 : index
    %264 = vector.load %arg4[%c22, %c0_90] : memref<24x16xf32, #tpu.memory_space<vmem>>, vector<1x4xf32>
    %265 = vector.broadcast %264 : vector<1x4xf32> to vector<10x4xf32>
    %266 = arith.mulf %263, %265 : vector<10x4xf32>
    %cst_91 = arith.constant dense<0.000000e+00> : vector<10xf32>
    %267 = vector.multi_reduction <add>, %266, %cst_91 [1] : vector<10x4xf32> to vector<10xf32>
    %268 = vector.shape_cast %267 : vector<10xf32> to vector<10x1xf32>
    %c23 = arith.constant 23 : index
    %c0_92 = arith.constant 0 : index
    %269 = vector.load %arg4[%c23, %c0_92] : memref<24x16xf32, #tpu.memory_space<vmem>>, vector<1x1xf32>
    %270 = vector.broadcast %269 : vector<1x1xf32> to vector<10x1xf32>
    %271 = arith.addf %268, %270 : vector<10x1xf32>
    %272 = tpu.transpose %271, [1, 0] : vector<10x1xf32> -> vector<1x10xf32>
    %273 = arith.negf %272 : vector<1x10xf32>
    %274 = math.exp %273 : vector<1x10xf32>
    %cst_93 = arith.constant 1.000000e+00 : f32
    %275 = vector.broadcast %cst_93 : f32 to vector<1x10xf32>
    %276 = arith.addf %275, %274 : vector<1x10xf32>
    %277 = arith.divf %275, %276 : vector<1x10xf32>
    %c0_94 = arith.constant 0 : index
    %c0_95 = arith.constant 0 : index
    %c0_96 = arith.constant 0 : index
    %278 = vector.load %arg5[%c0_94, %c0_95, %c0_96] : memref<1x1x10xf32, #tpu.memory_space<vmem>>, vector<1x1x10xf32>
    %279 = vector.shape_cast %278 : vector<1x1x10xf32> to vector<1x10xf32>
    %280 = vector.shape_cast %277 : vector<1x10xf32> to vector<1x1x10xf32>
    tpu.vector_store %arg5[%c0_94, %c0_95, %c0_96], %280 {strides = array<i32>} : memref<1x1x10xf32, #tpu.memory_space<vmem>>, vector<1x1x10xf32>,
    return
  }
  func.func @transform_0(%arg0: i32) -> (i32, i32, i32) {
    %c0_i32 = arith.constant 0 : i32
    %c0_i32_0 = arith.constant 0 : i32
    %c0_i32_1 = arith.constant 0 : i32
    return %arg0, %c0_i32, %c0_i32_0 : i32, i32, i32
  }
  func.func @transform_1(%arg0: i32) -> (i32, i32, i32) {
    %c0_i32 = arith.constant 0 : i32
    %c0_i32_0 = arith.constant 0 : i32
    %c0_i32_1 = arith.constant 0 : i32
    return %arg0, %c0_i32, %c0_i32_0 : i32, i32, i32
  }
  func.func @transform_2(%arg0: i32) -> (i32, i32) {
    %c0_i32 = arith.constant 0 : i32
    %c0_i32_0 = arith.constant 0 : i32
    %c0_i32_1 = arith.constant 0 : i32
    return %c0_i32, %c0_i32_0 : i32, i32
  }
  func.func @transform_3(%arg0: i32) -> (i32, i32) {
    %c0_i32 = arith.constant 0 : i32
    %c0_i32_0 = arith.constant 0 : i32
    %c0_i32_1 = arith.constant 0 : i32
    return %c0_i32, %c0_i32_0 : i32, i32
  }
  func.func @transform_4(%arg0: i32) -> (i32, i32, i32) {
    %c0_i32 = arith.constant 0 : i32
    %c0_i32_0 = arith.constant 0 : i32
    %c0_i32_1 = arith.constant 0 : i32
    return %arg0, %c0_i32, %c0_i32_0 : i32, i32, i32
  }
}

</mosaic_0001>

<llo_original>
// kernel: forward.1
$region0: #{forward.1}
  #allocation0 [shape = 'u32[]', space=smem, size = 0x4, offset = 0x4, fixed_abs, tag = 'smem constant byte address 0x4 - core index']
  #allocation1 [shape = 'u32[72,128]{1,0:T(1,128)}', space=vmem, size = 0x9000, scoped, tag = 'internal scratch']
  %s0 = inlined_call_operand.vmem [shape: f32[2,1,10], index: 0, kind: input, shape index: {}]
  %s1 = inlined_call_operand.vmem [shape: f32[2,1,10], index: 1, kind: input, shape index: {}]
  %s2 = inlined_call_operand.vmem [shape: f32[16,92], index: 2, kind: input, shape index: {}]
  %s3 = inlined_call_operand.vmem [shape: f32[24,16], index: 3, kind: input, shape index: {}]
  %s4 = inlined_call_operand.hbm [shape: f32[2,1,10], index: 4, kind: output, shape index: {}]
  %s5 = sld [smem:[#allocation0]]
  $region49: #{forward.1} parent=0
    _
  %s7 = ssub.s32 1, %s5
  %s8 = scalar_select 0, %s7, %s5
  $region1: #{forward.1} parent=0
    #allocation2 [shape = 'u8[1024]{0}', space=vmem, size = 0x400, scoped, tag = 'output window, operand 0']
    #allocation3 [shape = 's32[2]{0}', space=sflag, size = 0x8, scoped, tag = 'scoped memory for forward.1']
    %9 = vsyncpa [#allocation3], 0
    %s10 = scalar_lea.sflag [#allocation3], 1
    %11 = vsyncpa %s10, 0
    loop: start=0, step=1, limit=4
    $region2: #{forward.1} parent=1 // loop_pre_header
      _
    $region3: #{forward.1} parent=1 // loop_header
      %s13 = sphi 0, %s17
      %p14 = scmp.ge.s32.totalorder %s13, 4
      %s23 = sphi 0, %s25
      %s26 = sphi 0, %s23
      %s27 = sphi 0, %s26
      %s43 = sphi 0, %s27
      %s49 = sphi 0, %s51
      %s52 = sphi 0, %s49
      %s53 = sphi 0, %s52
      %s69 = sphi 0, %s53
      %s73 = sphi 0, %s73
      %s75 = sphi 0, %s73
      %s76 = sphi 0, %s75
      %s90 = sphi 0, %s76
      %s94 = sphi 0, %s94
      %s96 = sphi 0, %s94
      %s97 = sphi 0, %s96
      %s111 = sphi 0, %s97
      %s117 = sphi 0, %s119
      %s120 = sphi 0, %s117
      %s121 = sphi 0, %s120
      %s137 = sphi 0, %s121
    $region4: #{forward.1} parent=1 // loop_header_branch
      %16 = sbr.rel (%p14) target = $region8
    $region5: #{forward.1} parent=1 // loop_body
      %s18 = ssub.s32 %s13, 1
      %s19 = ssub.s32 %s13, 2
      %s20 = sadd.s32 %s13, 1
      %s21 = ssub.s32 %s13, %s20
      %p22 = scmp.eq.s32.totalorder %s21, 0
      %s24 = sadd.s32 %s23, 1
      %s25 = scalar_select %p22, %s23, %s24
      %p28 = pneg %p22
      %p29 = scmp.eq.s32.totalorder %s13, 1
      %p30 = por %p28, %p29
      %p31 = scmp.ne.s32.totalorder %s23, %s26
      %p32 = scmp.eq.s32.totalorder %s13, 0
      %p33 = por %p31, %p32
      %p34 = scmp.ne.s32.totalorder %s23, %s26
      %p35 = scmp.eq.s32.totalorder %s18, 1
      %p36 = por %p34, %p35
      %p37 = scmp.ne.s32.totalorder %s26, %s27
      %p38 = scmp.eq.s32.totalorder %s18, 0
      %p39 = por %p37, %p38
      %p40 = scmp.ne.s32.totalorder %s26, %s27
      %p41 = scmp.eq.s32.totalorder %s19, 1
      %p42 = por %p40, %p41
      %p44 = scmp.ne.s32.totalorder %s27, %s43
      %p45 = scmp.eq.s32.totalorder %s19, 0
      %p46 = por %p44, %p45
      %s47 = ssub.s32 %s13, %s20
      %p48 = scmp.eq.s32.totalorder %s47, 0
      %s50 = sadd.s32 %s49, 1
      %s51 = scalar_select %p48, %s49, %s50
      %p54 = pneg %p48
      %p55 = scmp.eq.s32.totalorder %s13, 1
      %p56 = por %p54, %p55
      %p57 = scmp.ne.s32.totalorder %s49, %s52
      %p58 = scmp.eq.s32.totalorder %s13, 0
      %p59 = por %p57, %p58
      %p60 = scmp.ne.s32.totalorder %s49, %s52
      %p61 = scmp.eq.s32.totalorder %s18, 1
      %p62 = por %p60, %p61
      %p63 = scmp.ne.s32.totalorder %s52, %s53
      %p64 = scmp.eq.s32.totalorder %s18, 0
      %p65 = por %p63, %p64
      %p66 = scmp.ne.s32.totalorder %s52, %s53
      %p67 = scmp.eq.s32.totalorder %s19, 1
      %p68 = por %p66, %p67
      %p70 = scmp.ne.s32.totalorder %s53, %s69
      %p71 = scmp.eq.s32.totalorder %s19, 0
      %p72 = por %p70, %p71
      %s74 = sadd.s32 %s73, 1
      %p77 = scmp.eq.s32.totalorder %s13, 1
      %p78 = scmp.ne.s32.totalorder %s73, %s75
      %p79 = scmp.eq.s32.totalorder %s13, 0
      %p80 = por %p78, %p79
      %p81 = scmp.ne.s32.totalorder %s73, %s75
      %p82 = scmp.eq.s32.totalorder %s18, 1
      %p83 = por %p81, %p82
      %p84 = scmp.ne.s32.totalorder %s75, %s76
      %p85 = scmp.eq.s32.totalorder %s18, 0
      %p86 = por %p84, %p85
      %p87 = scmp.ne.s32.totalorder %s75, %s76
      %p88 = scmp.eq.s32.totalorder %s19, 1
      %p89 = por %p87, %p88
      %p91 = scmp.ne.s32.totalorder %s76, %s90
      %p92 = scmp.eq.s32.totalorder %s19, 0
      %p93 = por %p91, %p92
      %s95 = sadd.s32 %s94, 1
      %p98 = scmp.eq.s32.totalorder %s13, 1
      %p99 = scmp.ne.s32.totalorder %s94, %s96
      %p100 = scmp.eq.s32.totalorder %s13, 0
      %p101 = por %p99, %p100
      %p102 = scmp.ne.s32.totalorder %s94, %s96
      %p103 = scmp.eq.s32.totalorder %s18, 1
      %p104 = por %p102, %p103
      %p105 = scmp.ne.s32.totalorder %s96, %s97
      %p106 = scmp.eq.s32.totalorder %s18, 0
      %p107 = por %p105, %p106
      %p108 = scmp.ne.s32.totalorder %s96, %s97
      %p109 = scmp.eq.s32.totalorder %s19, 1
      %p110 = por %p108, %p109
      %p112 = scmp.ne.s32.totalorder %s97, %s111
      %p113 = scmp.eq.s32.totalorder %s19, 0
      %p114 = por %p112, %p113
      %s115 = ssub.s32 %s13, %s20
      %p116 = scmp.eq.s32.totalorder %s115, 0
      %s118 = sadd.s32 %s117, 1
      %s119 = scalar_select %p116, %s117, %s118
      %p122 = pneg %p116
      %p123 = scmp.eq.s32.totalorder %s13, 1
      %p124 = por %p122, %p123
      %p125 = scmp.ne.s32.totalorder %s117, %s120
      %p126 = scmp.eq.s32.totalorder %s13, 0
      %p127 = por %p125, %p126
      %p128 = scmp.ne.s32.totalorder %s117, %s120
      %p129 = scmp.eq.s32.totalorder %s18, 1
      %p130 = por %p128, %p129
      %p131 = scmp.ne.s32.totalorder %s120, %s121
      %p132 = scmp.eq.s32.totalorder %s18, 0
      %p133 = por %p131, %p132
      %p134 = scmp.ne.s32.totalorder %s120, %s121
      %p135 = scmp.eq.s32.totalorder %s19, 1
      %p136 = por %p134, %p135
      %p138 = scmp.ne.s32.totalorder %s121, %s137
      %p139 = scmp.eq.s32.totalorder %s19, 0
      %p140 = por %p138, %p139
      %p141 = scmp.le.s32.totalorder 1, %s13
      %p142 = scmp.lt.s32.totalorder %s13, 3
      %p143 = pnand %p141, %p142
      %p144 = pneg %p143
      // Predicated region
      $region9: #{forward.1} parent=5 // pred_check
        _
      $region10: #{forward.1} parent=5 // pred_check_branch
        %146 = sbr.rel (%p143) target = $region12
      $region11: #{forward.1} parent=5 // pred_region
        %s147 = ssub.s32 %s13, 1
        // Predicated region
        $region13: #{forward.1} parent=11 // pred_check
          %p148 = pneg %p86
        $region14: #{forward.1} parent=11 // pred_check_branch
          %150 = sbr.rel (%p148) target = $region16
        $region15: #{forward.1} parent=11 // pred_region
          _
        $region16: #{forward.1} parent=11 // pred_fallthru
          _
        // Predicated region
        $region17: #{forward.1} parent=11 // pred_check
          %p151 = pneg %p107
        $region18: #{forward.1} parent=11 // pred_check_branch
          %153 = sbr.rel (%p151) target = $region20
        $region19: #{forward.1} parent=11 // pred_region
          _
        $region20: #{forward.1} parent=11 // pred_fallthru
          _
      $region12: #{forward.1} parent=5 // pred_fallthru
        _
      %p154 = scmp.lt.s32.totalorder %s13, 2
      // Predicated region
      $region21: #{forward.1} parent=5 // pred_check
        %p155 = pneg %p154
      $region22: #{forward.1} parent=5 // pred_check_branch
        %157 = sbr.rel (%p155) target = $region24
      $region23: #{forward.1} parent=5 // pred_region
        // Predicated region
        $region25: #{forward.1} parent=23 // pred_check
          %p158 = pneg %p33
        $region26: #{forward.1} parent=23 // pred_check_branch
          %160 = sbr.rel (%p158) target = $region28
        $region27: #{forward.1} parent=23 // pred_region
          %p161 = scmp.lt.s32.totalorder %s13, 1
          %s162 = scalar_select %p161, %s13, 1
          %s163 = scalar_lea.vmem %s0, %s162
        $region28: #{forward.1} parent=23 // pred_fallthru
          _
        // Predicated region
        $region29: #{forward.1} parent=23 // pred_check
          %p164 = pneg %p59
        $region30: #{forward.1} parent=23 // pred_check_branch
          %166 = sbr.rel (%p164) target = $region32
        $region31: #{forward.1} parent=23 // pred_region
          %p167 = scmp.lt.s32.totalorder %s13, 1
          %s168 = scalar_select %p167, %s13, 1
          %s169 = scalar_lea.vmem %s1, %s168
        $region32: #{forward.1} parent=23 // pred_fallthru
          _
      $region24: #{forward.1} parent=5 // pred_fallthru
        _
      %p170 = scmp.le.s32.totalorder 1, %s13
      %p171 = scmp.lt.s32.totalorder %s13, 3
      %p172 = pnand %p170, %p171
      %p173 = pneg %p172
      // Predicated region
      $region33: #{forward.1} parent=5 // pred_check
        _
      $region34: #{forward.1} parent=5 // pred_check_branch
        %175 = sbr.rel (%p172) target = $region36
      $region35: #{forward.1} parent=5 // pred_region
        %s176 = ssub.s32 %s13, 1
        %p177 = scmp.lt.s32.totalorder %s18, 1
        %s178 = scalar_select %p177, %s18, 1
        %s179 = scalar_lea.vmem %s0, %s178
        %p180 = pneg %p39
        %p181 = pneg %p36
        %p182 = scmp.lt.s32.totalorder %s18, 1
        %s183 = scalar_select %p182, %s18, 1
        %s184 = scalar_lea.vmem %s1, %s183
        %p185 = pneg %p65
        %p186 = pneg %p62
        %p187 = pneg %p86
        %p188 = pneg %p83
        %p189 = pneg %p107
        %p190 = pneg %p104
        %p191 = pneg %p133
        %p192 = pneg %p130
        %s193 = sand.u32 %s120, 1
        %s194 = scalar_lea.sflag [#allocation3], %s193
        %s195 = sand.u32 %s120, 1
        %s196 = scalar_lea.vmem [#allocation2], %s195
        %p197 = scmp.lt.s32.totalorder %s18, 1
        %s198 = scalar_select %p197, %s18, 1
        %s199 = scalar_lea.vmem %s0, %s198
        %p200 = scmp.lt.s32.totalorder %s18, 1
        %s201 = scalar_select %p200, %s18, 1
        %s202 = scalar_lea.vmem %s1, %s201
        %v203 = vld [vmem:[%s3] sm:$0x1]
        %v204 = vld [vmem:[%s2] sm:$0xff]
        %v205 = vld [vmem:[%s2 + $0x8] sm:$0x3]
        %v206 = vld [vmem:[%s199] sm:$0x1]
        %207 = vxpose.xlu0.b32.start [1/16] %v206, 128
        %208 = vxpose.xlu0.b32.cont [2/16] 0.0, 128
        %209 = vxpose.xlu0.b32.cont [3/16] 0.0, 128
        %210 = vxpose.xlu0.b32.cont [4/16] 0.0, 128
        %211 = vxpose.xlu0.b32.cont [5/16] 0.0, 128
        %212 = vxpose.xlu0.b32.cont [6/16] 0.0, 128
        %213 = vxpose.xlu0.b32.cont [7/16] 0.0, 128
        %214 = vxpose.xlu0.b32.cont [8/16] 0.0, 128
        %215 = vxpose.xlu0.b32.cont [9/16] 0.0, 128
        %216 = vxpose.xlu0.b32.cont [10/16] 0.0, 128
        %217 = vxpose.xlu0.b32.cont [11/16] 0.0, 128
        %218 = vxpose.xlu0.b32.cont [12/16] 0.0, 128
        %219 = vxpose.xlu0.b32.cont [13/16] 0.0, 128
        %220 = vxpose.xlu0.b32.cont [14/16] 0.0, 128
        %221 = vxpose.xlu0.b32.cont [15/16] 0.0, 128
        %222 = vxpose.xlu0.b32.end [16/16] 0.0, 128
        %v223 = vpop.trf.xlu0
        %v224 = vpop.trf.xlu0
        %v225 = vpop.trf.xlu0
        %v226 = vpop.trf.xlu0
        %v227 = vpop.trf.xlu0
        %v228 = vpop.trf.xlu0
        %v229 = vpop.trf.xlu0
        %v230 = vpop.trf.xlu0
        %v231 = vpop.trf.xlu0
        %v232 = vpop.trf.xlu0
        %v233 = vpop.trf.xlu0
        %v234 = vpop.trf.xlu0
        %v235 = vpop.trf.xlu0
        %v236 = vpop.trf.xlu0
        %v237 = vpop.trf.xlu0
        %v238 = vpop.trf.xlu0
        %240 = vset.pattern.permute.xlu0 0
        %241 = vperm.xlu0 %240, %v223
        %v242 = vpop.permute.xlu0 %241
        %245 = vset.pattern.permute.xlu0 0
        %246 = vperm.xlu0 %245, %v224
        %v247 = vpop.permute.xlu0 %246
        %v249 = vperm.slane %v203, 0
        %v250 = vmul.f32 %v242, %v249
        %v251 = vmul.f32 %v247, %v249
        %v252 = vadd.f32 %v250, %v204
        %v253 = vadd.f32 %v251, %v205
        %v254 = vld [vmem:[%s2] sm:$0xf]
        %v255 = vld [vmem:[%s3 + $0x1] sm:$0x1]
        %v256 = vperm.slane %v255, 0
        %258 = vrot.lane.b32.xlu0 %v254, 124
        %v259 = vpop.permute.xlu0 %258
        %vm260 = vcmask 31744
        %v262 = vsel %vm260, %v252, 0
        %v265 = vsel %vm260, %v253, 0
        %vm267 = vcmask 1043456
        %v268 = vsel %vm267, %v259, 0
        %270 = vmatpush.msra.mxu0 0.0
        %271 = vmatpush.msra.mxu0 0.0
        %272 = vmatpush.msra.mxu0 0.0
        %273 = vmatpush.msra.mxu0 0.0
        %274 = vmatpush.msra.mxu0 0.0
        %275 = vmatpush.msra.mxu0 0.0
        %276 = vmatpush.msra.mxu0 0.0
        %277 = vmatpush.msra.mxu0 0.0
        %278 = vmatpush.msra.mxu0 0.0
        %279 = vmatpush.msra.mxu0 0.0
        %280 = vmatpush.msra.mxu0 0.0
        %281 = vmatpush.msra.mxu0 0.0
        %282 = vmatpush.msra.mxu0 0.0
        %283 = vmatpush.msra.mxu0 0.0
        %284 = vmatpush.msra.mxu0 0.0
        %285 = vmatpush.msra.mxu0 %v268
        %286 = vmatmul.f32.gmra.mxu0 %v262
        %v287 = vpop.f32.mrf.mxu0
        %v288 = vadd.f32 %v256, %v287
        %289 = vmatmul.f32.gmra.mxu0 %v265
        %v290 = vpop.f32.mrf.mxu0
        %v291 = vadd.f32 %v256, %v290
        %292 = vdwg.mxu0
        %293 = vxpose.xlu0.b32.start [1/16] %v288, 128
        %294 = vxpose.xlu0.b32.cont [2/16] %v291, 128
        %295 = vxpose.xlu0.b32.cont [3/16] 0.0, 128
        %296 = vxpose.xlu0.b32.cont [4/16] 0.0, 128
        %297 = vxpose.xlu0.b32.cont [5/16] 0.0, 128
        %298 = vxpose.xlu0.b32.cont [6/16] 0.0, 128
        %299 = vxpose.xlu0.b32.cont [7/16] 0.0, 128
        %300 = vxpose.xlu0.b32.cont [8/16] 0.0, 128
        %301 = vxpose.xlu0.b32.cont [9/16] 0.0, 128
        %302 = vxpose.xlu0.b32.cont [10/16] 0.0, 128
        %303 = vxpose.xlu0.b32.cont [11/16] 0.0, 128
        %304 = vxpose.xlu0.b32.cont [12/16] 0.0, 128
        %305 = vxpose.xlu0.b32.cont [13/16] 0.0, 128
        %306 = vxpose.xlu0.b32.cont [14/16] 0.0, 128
        %307 = vxpose.xlu0.b32.cont [15/16] 0.0, 128
        %308 = vxpose.xlu0.b32.end [16/16] 0.0, 128
        %v309 = vpop.trf.xlu0
        %v310 = vpop.trf.xlu0
        %v311 = vpop.trf.xlu0
        %v312 = vpop.trf.xlu0
        %v313 = vpop.trf.xlu0
        %v314 = vpop.trf.xlu0
        %v315 = vpop.trf.xlu0
        %v316 = vpop.trf.xlu0
        %v317 = vpop.trf.xlu0
        %v318 = vpop.trf.xlu0
        %v319 = vpop.trf.xlu0
        %v320 = vpop.trf.xlu0
        %v321 = vpop.trf.xlu0
        %v322 = vpop.trf.xlu0
        %v323 = vpop.trf.xlu0
        %v324 = vpop.trf.xlu0
        %327 = vrot.lane.b32.xlu0 %v288, 124
        %v328 = vpop.permute.xlu0 %327
        %329 = vrot.lane.b32.xlu0 %v291, 124
        %v330 = vpop.permute.xlu0 %329
        %333 = vxpose.xlu0.b32.start [1/16] %v328, 128
        %334 = vxpose.xlu0.b32.cont [2/16] %v330, 128
        %335 = vxpose.xlu0.b32.cont [3/16] 0.0, 128
        %336 = vxpose.xlu0.b32.cont [4/16] 0.0, 128
        %337 = vxpose.xlu0.b32.cont [5/16] 0.0, 128
        %338 = vxpose.xlu0.b32.cont [6/16] 0.0, 128
        %339 = vxpose.xlu0.b32.cont [7/16] 0.0, 128
        %340 = vxpose.xlu0.b32.cont [8/16] 0.0, 128
        %341 = vxpose.xlu0.b32.cont [9/16] 0.0, 128
        %342 = vxpose.xlu0.b32.cont [10/16] 0.0, 128
        %343 = vxpose.xlu0.b32.cont [11/16] 0.0, 128
        %344 = vxpose.xlu0.b32.cont [12/16] 0.0, 128
        %345 = vxpose.xlu0.b32.cont [13/16] 0.0, 128
        %346 = vxpose.xlu0.b32.cont [14/16] 0.0, 128
        %347 = vxpose.xlu0.b32.cont [15/16] 0.0, 128
        %348 = vxpose.xlu0.b32.end [16/16] 0.0, 128
        %v349 = vpop.trf.xlu0
        %v350 = vpop.trf.xlu0
        %v351 = vpop.trf.xlu0
        %v352 = vpop.trf.xlu0
        %v353 = vpop.trf.xlu0
        %v354 = vpop.trf.xlu0
        %v355 = vpop.trf.xlu0
        %v356 = vpop.trf.xlu0
        %v357 = vpop.trf.xlu0
        %v358 = vpop.trf.xlu0
        %v359 = vpop.trf.xlu0
        %v360 = vpop.trf.xlu0
        %v361 = vpop.trf.xlu0
        %v362 = vpop.trf.xlu0
        %v363 = vpop.trf.xlu0
        %v364 = vpop.trf.xlu0
        %365 = vrot.lane.b32.xlu0 %v288, 120
        %v366 = vpop.permute.xlu0 %365
        %367 = vrot.lane.b32.xlu0 %v291, 120
        %v368 = vpop.permute.xlu0 %367
        %371 = vxpose.xlu0.b32.start [1/16] %v366, 128
        %372 = vxpose.xlu0.b32.cont [2/16] %v368, 128
        %373 = vxpose.xlu0.b32.cont [3/16] 0.0, 128
        %374 = vxpose.xlu0.b32.cont [4/16] 0.0, 128
        %375 = vxpose.xlu0.b32.cont [5/16] 0.0, 128
        %376 = vxpose.xlu0.b32.cont [6/16] 0.0, 128
        %377 = vxpose.xlu0.b32.cont [7/16] 0.0, 128
        %378 = vxpose.xlu0.b32.cont [8/16] 0.0, 128
        %379 = vxpose.xlu0.b32.cont [9/16] 0.0, 128
        %380 = vxpose.xlu0.b32.cont [10/16] 0.0, 128
        %381 = vxpose.xlu0.b32.cont [11/16] 0.0, 128
        %382 = vxpose.xlu0.b32.cont [12/16] 0.0, 128
        %383 = vxpose.xlu0.b32.cont [13/16] 0.0, 128
        %384 = vxpose.xlu0.b32.cont [14/16] 0.0, 128
        %385 = vxpose.xlu0.b32.cont [15/16] 0.0, 128
        %386 = vxpose.xlu0.b32.end [16/16] 0.0, 128
        %v387 = vpop.trf.xlu0
        %v388 = vpop.trf.xlu0
        %v389 = vpop.trf.xlu0
        %v390 = vpop.trf.xlu0
        %v391 = vpop.trf.xlu0
        %v392 = vpop.trf.xlu0
        %v393 = vpop.trf.xlu0
        %v394 = vpop.trf.xlu0
        %v395 = vpop.trf.xlu0
        %v396 = vpop.trf.xlu0
        %v397 = vpop.trf.xlu0
        %v398 = vpop.trf.xlu0
        %v399 = vpop.trf.xlu0
        %v400 = vpop.trf.xlu0
        %v401 = vpop.trf.xlu0
        %v402 = vpop.trf.xlu0
        %v403 = vperm.slane %v309, 0
        %v404 = vlaneseq
        %v405 = vshrl.u32 %v404, 7
        %407 = vset.pattern.permute.xlu0 %v405
        %408 = vperm.xlu0 %407, %v403
        %v409 = vpop.permute.xlu0 %408
        %v410 = vlaneseq
        %v411 = vshrl.u32 %v410, 7
        %v412 = vadd.s32 %v411, 8
        %413 = vset.pattern.permute.xlu0 %v412
        %414 = vperm.xlu0 %413, %v403
        %v415 = vpop.permute.xlu0 %414
        %v416 = vperm.slane %v309, 1
        %v417 = vlaneseq
        %v418 = vshrl.u32 %v417, 7
        %420 = vset.pattern.permute.xlu0 %v418
        %421 = vperm.xlu0 %420, %v416
        %v422 = vpop.permute.xlu0 %421
        %v423 = vlaneseq
        %v424 = vshrl.u32 %v423, 7
        %v425 = vadd.s32 %v424, 8
        %426 = vset.pattern.permute.xlu0 %v425
        %427 = vperm.xlu0 %426, %v416
        %v428 = vpop.permute.xlu0 %427
        %v429 = vperm.slane %v309, 2
        %v430 = vlaneseq
        %v431 = vshrl.u32 %v430, 7
        %433 = vset.pattern.permute.xlu0 %v431
        %434 = vperm.xlu0 %433, %v429
        %v435 = vpop.permute.xlu0 %434
        %v436 = vlaneseq
        %v437 = vshrl.u32 %v436, 7
        %v438 = vadd.s32 %v437, 8
        %439 = vset.pattern.permute.xlu0 %v438
        %440 = vperm.xlu0 %439, %v429
        %v441 = vpop.permute.xlu0 %440
        %v442 = vperm.slane %v309, 3
        %v443 = vlaneseq
        %v444 = vshrl.u32 %v443, 7
        %446 = vset.pattern.permute.xlu0 %v444
        %447 = vperm.xlu0 %446, %v442
        %v448 = vpop.permute.xlu0 %447
        %v449 = vlaneseq
        %v450 = vshrl.u32 %v449, 7
        %v451 = vadd.s32 %v450, 8
        %452 = vset.pattern.permute.xlu0 %v451
        %453 = vperm.xlu0 %452, %v442
        %v454 = vpop.permute.xlu0 %453
        %v456 = vrot.slane %v349, 1
        %v457 = vrot.slane %v349, 2
        %v458 = vrot.slane %v349, 3
        %v459 = vperm.slane %v349, 0
        %v460 = vperm.slane %v456, 0
        %v461 = vperm.slane %v457, 0
        %v462 = vperm.slane %v458, 0
        %v467 = vmul.f32 %v409, %v459
        %v468 = vmul.f32 %v415, %v459
        %v469 = vmul.f32 %v422, %v460
        %v470 = vmul.f32 %v428, %v460
        %v471 = vmul.f32 %v435, %v461
        %v472 = vmul.f32 %v441, %v461
        %v473 = vmul.f32 %v448, %v462
        %v474 = vmul.f32 %v454, %v462
        %vm475 = vcmask 80896
        %v476 = vsel %vm475, %v467, -inf
        %477 = vmax.xlane.f32.xlu0 %v476
        %v478 = vpop.xlane.xlu0 %477
        %vm479 = vcmask 74752
        %v480 = vsel %vm479, %v468, -inf
        %481 = vmax.xlane.f32.xlu0 %v480
        %v482 = vpop.xlane.xlu0 %481
        %v483 = vsel %vm475, %v469, -inf
        %484 = vmax.xlane.f32.xlu0 %v483
        %v485 = vpop.xlane.xlu0 %484
        %v486 = vsel %vm479, %v470, -inf
        %487 = vmax.xlane.f32.xlu0 %v486
        %v488 = vpop.xlane.xlu0 %487
        %v489 = vsel %vm475, %v471, -inf
        %490 = vmax.xlane.f32.xlu0 %v489
        %v491 = vpop.xlane.xlu0 %490
        %v492 = vsel %vm479, %v472, -inf
        %493 = vmax.xlane.f32.xlu0 %v492
        %v494 = vpop.xlane.xlu0 %493
        %v495 = vsel %vm475, %v473, -inf
        %496 = vmax.xlane.f32.xlu0 %v495
        %v497 = vpop.xlane.xlu0 %496
        %v498 = vsel %vm479, %v474, -inf
        %499 = vmax.xlane.f32.xlu0 %v498
        %v500 = vpop.xlane.xlu0 %499
        %v501 = vsub.f32 %v467, %v478
        %v502 = vsub.f32 %v468, %v482
        %v503 = vsub.f32 %v469, %v485
        %v504 = vsub.f32 %v470, %v488
        %v505 = vsub.f32 %v471, %v491
        %v506 = vsub.f32 %v472, %v494
        %v507 = vsub.f32 %v473, %v497
        %v508 = vsub.f32 %v474, %v500
        %v509 = vmul.f32 %v501, 1.442695
        %v510 = vpow.pop %v509
        %v511 = vmul.f32 %v502, 1.442695
        %v512 = vpow.pop %v511
        %v513 = vmul.f32 %v503, 1.442695
        %v514 = vpow.pop %v513
        %v515 = vmul.f32 %v504, 1.442695
        %v516 = vpow.pop %v515
        %v517 = vmul.f32 %v505, 1.442695
        %v518 = vpow.pop %v517
        %v519 = vmul.f32 %v506, 1.442695
        %v520 = vpow.pop %v519
        %v521 = vmul.f32 %v507, 1.442695
        %v522 = vpow.pop %v521
        %v523 = vmul.f32 %v508, 1.442695
        %v524 = vpow.pop %v523
        %v525 = vsel %vm475, %v510, 0.0
        %526 = vadd.xlane.f32.xlu0 %v525
        %v527 = vpop.xlane.xlu0 %526
        %v528 = vsel %vm479, %v512, 0.0
        %529 = vadd.xlane.f32.xlu0 %v528
        %v530 = vpop.xlane.xlu0 %529
        %v531 = vsel %vm475, %v514, 0.0
        %532 = vadd.xlane.f32.xlu0 %v531
        %v533 = vpop.xlane.xlu0 %532
        %v534 = vsel %vm479, %v516, 0.0
        %535 = vadd.xlane.f32.xlu0 %v534
        %v536 = vpop.xlane.xlu0 %535
        %v537 = vsel %vm475, %v518, 0.0
        %538 = vadd.xlane.f32.xlu0 %v537
        %v539 = vpop.xlane.xlu0 %538
        %v540 = vsel %vm479, %v520, 0.0
        %541 = vadd.xlane.f32.xlu0 %v540
        %v542 = vpop.xlane.xlu0 %541
        %v543 = vsel %vm475, %v522, 0.0
        %544 = vadd.xlane.f32.xlu0 %v543
        %v545 = vpop.xlane.xlu0 %544
        %v546 = vsel %vm479, %v524, 0.0
        %547 = vadd.xlane.f32.xlu0 %v546
        %v548 = vpop.xlane.xlu0 %547
        %v549 = vrcp.pop %v527
        %v550 = vmul.f32 %v527, %v549
        %v551 = vsub.f32 1.0, %v550
        %v552 = vmul.f32 %v549, %v551
        %v553 = vadd.f32 %v549, %v552
        %vm554 = vweird.f32 %v527
        %vm555 = vweird.f32 %v549
        %vm556 = vmor %vm554, %vm555
        %v557 = vsel %vm556, %v549, %v553
        %v558 = vand.u32 2147483647, %v527
        %vm559 = vcmp.eq.f32.partialorder %v558, 8.507059e+37
        %v560 = vand.u32 %v527, 2147483648
        %v561 = vor.u32 1.1754944e-38, %v560
        %v562 = vsel %vm559, %v561, %v557
        %v563 = vmul.f32 %v510, %v562
        %v564 = vrcp.pop %v530
        %v565 = vmul.f32 %v530, %v564
        %v566 = vsub.f32 1.0, %v565
        %v567 = vmul.f32 %v564, %v566
        %v568 = vadd.f32 %v564, %v567
        %vm569 = vweird.f32 %v530
        %vm570 = vweird.f32 %v564
        %vm571 = vmor %vm569, %vm570
        %v572 = vsel %vm571, %v564, %v568
        %v573 = vand.u32 2147483647, %v530
        %vm574 = vcmp.eq.f32.partialorder %v573, 8.507059e+37
        %v575 = vand.u32 %v530, 2147483648
        %v576 = vor.u32 1.1754944e-38, %v575
        %v577 = vsel %vm574, %v576, %v572
        %v578 = vmul.f32 %v512, %v577
        %v579 = vrcp.pop %v533
        %v580 = vmul.f32 %v533, %v579
        %v581 = vsub.f32 1.0, %v580
        %v582 = vmul.f32 %v579, %v581
        %v583 = vadd.f32 %v579, %v582
        %vm584 = vweird.f32 %v533
        %vm585 = vweird.f32 %v579
        %vm586 = vmor %vm584, %vm585
        %v587 = vsel %vm586, %v579, %v583
        %v588 = vand.u32 2147483647, %v533
        %vm589 = vcmp.eq.f32.partialorder %v588, 8.507059e+37
        %v590 = vand.u32 %v533, 2147483648
        %v591 = vor.u32 1.1754944e-38, %v590
        %v592 = vsel %vm589, %v591, %v587
        %v593 = vmul.f32 %v514, %v592
        %v594 = vrcp.pop %v536
        %v595 = vmul.f32 %v536, %v594
        %v596 = vsub.f32 1.0, %v595
        %v597 = vmul.f32 %v594, %v596
        %v598 = vadd.f32 %v594, %v597
        %vm599 = vweird.f32 %v536
        %vm600 = vweird.f32 %v594
        %vm601 = vmor %vm599, %vm600
        %v602 = vsel %vm601, %v594, %v598
        %v603 = vand.u32 2147483647, %v536
        %vm604 = vcmp.eq.f32.partialorder %v603, 8.507059e+37
        %v605 = vand.u32 %v536, 2147483648
        %v606 = vor.u32 1.1754944e-38, %v605
        %v607 = vsel %vm604, %v606, %v602
        %v608 = vmul.f32 %v516, %v607
        %v609 = vrcp.pop %v539
        %v610 = vmul.f32 %v539, %v609
        %v611 = vsub.f32 1.0, %v610
        %v612 = vmul.f32 %v609, %v611
        %v613 = vadd.f32 %v609, %v612
        %vm614 = vweird.f32 %v539
        %vm615 = vweird.f32 %v609
        %vm616 = vmor %vm614, %vm615
        %v617 = vsel %vm616, %v609, %v613
        %v618 = vand.u32 2147483647, %v539
        %vm619 = vcmp.eq.f32.partialorder %v618, 8.507059e+37
        %v620 = vand.u32 %v539, 2147483648
        %v621 = vor.u32 1.1754944e-38, %v620
        %v622 = vsel %vm619, %v621, %v617
        %v623 = vmul.f32 %v518, %v622
        %v624 = vrcp.pop %v542
        %v625 = vmul.f32 %v542, %v624
        %v626 = vsub.f32 1.0, %v625
        %v627 = vmul.f32 %v624, %v626
        %v628 = vadd.f32 %v624, %v627
        %vm629 = vweird.f32 %v542
        %vm630 = vweird.f32 %v624
        %vm631 = vmor %vm629, %vm630
        %v632 = vsel %vm631, %v624, %v628
        %v633 = vand.u32 2147483647, %v542
        %vm634 = vcmp.eq.f32.partialorder %v633, 8.507059e+37
        %v635 = vand.u32 %v542, 2147483648
        %v636 = vor.u32 1.1754944e-38, %v635
        %v637 = vsel %vm634, %v636, %v632
        %v638 = vmul.f32 %v520, %v637
        %v639 = vrcp.pop %v545
        %v640 = vmul.f32 %v545, %v639
        %v641 = vsub.f32 1.0, %v640
        %v642 = vmul.f32 %v639, %v641
        %v643 = vadd.f32 %v639, %v642
        %vm644 = vweird.f32 %v545
        %vm645 = vweird.f32 %v639
        %vm646 = vmor %vm644, %vm645
        %v647 = vsel %vm646, %v639, %v643
        %v648 = vand.u32 2147483647, %v545
        %vm649 = vcmp.eq.f32.partialorder %v648, 8.507059e+37
        %v650 = vand.u32 %v545, 2147483648
        %v651 = vor.u32 1.1754944e-38, %v650
        %v652 = vsel %vm649, %v651, %v647
        %v653 = vmul.f32 %v522, %v652
        %v654 = vrcp.pop %v548
        %v655 = vmul.f32 %v548, %v654
        %v656 = vsub.f32 1.0, %v655
        %v657 = vmul.f32 %v654, %v656
        %v658 = vadd.f32 %v654, %v657
        %vm659 = vweird.f32 %v548
        %vm660 = vweird.f32 %v654
        %vm661 = vmor %vm659, %vm660
        %v662 = vsel %vm661, %v654, %v658
        %v663 = vand.u32 2147483647, %v548
        %vm664 = vcmp.eq.f32.partialorder %v663, 8.507059e+37
        %v665 = vand.u32 %v548, 2147483648
        %v666 = vor.u32 1.1754944e-38, %v665
        %v667 = vsel %vm664, %v666, %v662
        %v668 = vmul.f32 %v524, %v667
        %v670 = vrot.slane %v387, 1
        %v671 = vrot.slane %v387, 2
        %v672 = vrot.slane %v387, 3
        %v673 = vperm.slane %v387, 0
        %v674 = vperm.slane %v670, 0
        %v675 = vperm.slane %v671, 0
        %v676 = vperm.slane %v672, 0
        %v681 = vmul.f32 %v563, %v673
        %v682 = vmul.f32 %v578, %v673
        %v683 = vmul.f32 %v593, %v674
        %v684 = vmul.f32 %v608, %v674
        %v685 = vmul.f32 %v623, %v675
        %v686 = vmul.f32 %v638, %v675
        %v687 = vmul.f32 %v653, %v676
        %v688 = vmul.f32 %v668, %v676
        %v689 = vsel %vm475, %v681, 0.0
        %690 = vadd.xlane.f32.xlu0 %v689
        %v691 = vpop.xlane.xlu0 %690
        %v692 = vsel %vm479, %v682, 0.0
        %693 = vadd.xlane.f32.xlu0 %v692
        %v694 = vpop.xlane.xlu0 %693
        %v695 = vsel %vm475, %v683, 0.0
        %696 = vadd.xlane.f32.xlu0 %v695
        %v697 = vpop.xlane.xlu0 %696
        %v698 = vsel %vm479, %v684, 0.0
        %699 = vadd.xlane.f32.xlu0 %v698
        %v700 = vpop.xlane.xlu0 %699
        %v701 = vsel %vm475, %v685, 0.0
        %702 = vadd.xlane.f32.xlu0 %v701
        %v703 = vpop.xlane.xlu0 %702
        %v704 = vsel %vm479, %v686, 0.0
        %705 = vadd.xlane.f32.xlu0 %v704
        %v706 = vpop.xlane.xlu0 %705
        %v707 = vsel %vm475, %v687, 0.0
        %708 = vadd.xlane.f32.xlu0 %v707
        %v709 = vpop.xlane.xlu0 %708
        %v710 = vsel %vm479, %v688, 0.0
        %711 = vadd.xlane.f32.xlu0 %v710
        %v712 = vpop.xlane.xlu0 %711
        %v721 = vlaneseq
        %v722 = vand.u32 %v721, 127
        %v723 = vperm.slane %v691, %v722
        %v724 = vadd.s32 %v722, 4294967288
        %v725 = vperm.slane %v694, %v724
        %vm726 = vcmask 130112
        %v727 = vsel %vm726, %v725, %v723
        %v728 = vperm.slane %v697, %v722
        %v729 = vperm.slane %v700, %v724
        %v730 = vsel %vm726, %v729, %v728
        %v731 = vperm.slane %v703, %v722
        %v732 = vperm.slane %v706, %v724
        %v733 = vsel %vm726, %v732, %v731
        %v734 = vperm.slane %v709, %v722
        %v735 = vperm.slane %v712, %v724
        %v736 = vsel %vm726, %v735, %v734
        %vm737 = vcmask 1041409
        %v738 = vsel %vm737, %v730, %v727
        %vm739 = vcmask 1042434
        %v740 = vsel %vm739, %v733, %v738
        %vm741 = vcmask 1043459
        %v742 = vsel %vm741, %v736, %v740
        %744 = vxpose.xlu0.b32.start [1/16] %v742, 128
        %745 = vxpose.xlu0.b32.cont [2/16] 0.0, 128
        %746 = vxpose.xlu0.b32.cont [3/16] 0.0, 128
        %747 = vxpose.xlu0.b32.cont [4/16] 0.0, 128
        %748 = vxpose.xlu0.b32.cont [5/16] 0.0, 128
        %749 = vxpose.xlu0.b32.cont [6/16] 0.0, 128
        %750 = vxpose.xlu0.b32.cont [7/16] 0.0, 128
        %751 = vxpose.xlu0.b32.cont [8/16] 0.0, 128
        %752 = vxpose.xlu0.b32.cont [9/16] 0.0, 128
        %753 = vxpose.xlu0.b32.cont [10/16] 0.0, 128
        %754 = vxpose.xlu0.b32.cont [11/16] 0.0, 128
        %755 = vxpose.xlu0.b32.cont [12/16] 0.0, 128
        %756 = vxpose.xlu0.b32.cont [13/16] 0.0, 128
        %757 = vxpose.xlu0.b32.cont [14/16] 0.0, 128
        %758 = vxpose.xlu0.b32.cont [15/16] 0.0, 128
        %759 = vxpose.xlu0.b32.end [16/16] 0.0, 128
        %v760 = vpop.trf.xlu0
        %v761 = vpop.trf.xlu0
        %v762 = vpop.trf.xlu0
        %v763 = vpop.trf.xlu0
        %v764 = vpop.trf.xlu0
        %v765 = vpop.trf.xlu0
        %v766 = vpop.trf.xlu0
        %v767 = vpop.trf.xlu0
        %v768 = vpop.trf.xlu0
        %v769 = vpop.trf.xlu0
        %v770 = vpop.trf.xlu0
        %v771 = vpop.trf.xlu0
        %v772 = vpop.trf.xlu0
        %v773 = vpop.trf.xlu0
        %v774 = vpop.trf.xlu0
        %v775 = vpop.trf.xlu0
        %v776 = vld [vmem:[%s3 + $0x2] sm:$0x1]
        %v777 = vperm.slane %v776, 0
        %778 = vrot.lane.b32.xlu0 %v254, 112
        %v779 = vpop.permute.xlu0 %778
        %v781 = vsel %vm260, %v760, 0
        %v784 = vsel %vm260, %v761, 0
        %v786 = vsel %vm267, %v779, 0
        %788 = vmatpush.msra.mxu0 0.0
        %789 = vmatpush.msra.mxu0 0.0
        %790 = vmatpush.msra.mxu0 0.0
        %791 = vmatpush.msra.mxu0 0.0
        %792 = vmatpush.msra.mxu0 0.0
        %793 = vmatpush.msra.mxu0 0.0
        %794 = vmatpush.msra.mxu0 0.0
        %795 = vmatpush.msra.mxu0 0.0
        %796 = vmatpush.msra.mxu0 0.0
        %797 = vmatpush.msra.mxu0 0.0
        %798 = vmatpush.msra.mxu0 0.0
        %799 = vmatpush.msra.mxu0 0.0
        %800 = vmatpush.msra.mxu0 0.0
        %801 = vmatpush.msra.mxu0 0.0
        %802 = vmatpush.msra.mxu0 0.0
        %803 = vmatpush.msra.mxu0 %v786
        %804 = vmatmul.f32.gmra.mxu0 %v781
        %v805 = vpop.f32.mrf.mxu0
        %v806 = vadd.f32 %v777, %v805
        %807 = vmatmul.f32.gmra.mxu0 %v784
        %v808 = vpop.f32.mrf.mxu0
        %v809 = vadd.f32 %v777, %v808
        %810 = vdwg.mxu0
        %v811 = vadd.f32 %v252, %v806
        %v812 = vadd.f32 %v253, %v809
        %v813 = vsel %vm260, %v811, 0.0
        %814 = vadd.xlane.f32.xlu0 %v813
        %v815 = vpop.xlane.xlu0 %814
        %vm816 = vcmask 25600
        %v817 = vsel %vm816, %v812, 0.0
        %818 = vadd.xlane.f32.xlu0 %v817
        %v819 = vpop.xlane.xlu0 %818
        %v820 = vrcp.pop 4.0
        %v821 = vmul.f32 4.0, %v820
        %v822 = vsub.f32 1.0, %v821
        %v823 = vmul.f32 %v820, %v822
        %v824 = vadd.f32 %v820, %v823
        %vm825 = vweird.f32 %v820
        %v826 = vsel %vm825, %v820, %v824
        %v827 = vmul.f32 %v815, %v826
        %v828 = vmul.f32 %v819, %v826
        %v829 = vsub.f32 %v811, %v827
        %v830 = vsub.f32 %v812, %v828
        %v831 = vmul.f32 %v829, %v829
        %v832 = vmul.f32 %v830, %v830
        %v833 = vsel %vm260, %v831, 0.0
        %834 = vadd.xlane.f32.xlu0 %v833
        %v835 = vpop.xlane.xlu0 %834
        %v836 = vsel %vm816, %v832, 0.0
        %837 = vadd.xlane.f32.xlu0 %v836
        %v838 = vpop.xlane.xlu0 %837
        %v839 = vmul.f32 %v835, %v826
        %v840 = vmul.f32 %v838, %v826
        %v841 = vadd.f32 %v839, 1e-05
        %v842 = vadd.f32 %v840, 1e-05
        %v843 = vrsqrt.pop %v841
        %v844 = vmul.f32 %v843, %v841
        %v845 = vmul.f32 %v844, %v843
        %v846 = vmul.f32 0.5, %v845
        %v847 = vsub.f32 1.5, %v846
        %v848 = vmul.f32 %v843, %v847
        %vm849 = vweird.f32 %v841
        %vm850 = vweird.f32 %v843
        %vm851 = vmor %vm849, %vm850
        %v852 = vsel %vm851, %v843, %v848
        %v853 = vrsqrt.pop %v842
        %v854 = vmul.f32 %v853, %v842
        %v855 = vmul.f32 %v854, %v853
        %v856 = vmul.f32 0.5, %v855
        %v857 = vsub.f32 1.5, %v856
        %v858 = vmul.f32 %v853, %v857
        %vm859 = vweird.f32 %v842
        %vm860 = vweird.f32 %v853
        %vm861 = vmor %vm859, %vm860
        %v862 = vsel %vm861, %v853, %v858
        %v863 = vmul.f32 %v829, %v852
        %v864 = vmul.f32 %v830, %v862
        %v865 = vld [vmem:[%s3 + $0x3] sm:$0x1]
        %v866 = vperm.slane %v865, 0
        %v867 = vmul.f32 %v863, %v866
        %v868 = vmul.f32 %v864, %v866
        %v869 = vld [vmem:[%s3 + $0x4] sm:$0x1]
        %v870 = vperm.slane %v869, 0
        %v871 = vadd.f32 %v867, %v870
        %v872 = vadd.f32 %v868, %v870
        %v873 = vld [vmem:[%s3 + $0x5] sm:$0x1]
        %v874 = vperm.slane %v873, 0
        %875 = vrot.lane.b32.xlu0 %v254, 108
        %v876 = vpop.permute.xlu0 %875
        %v878 = vsel %vm260, %v871, 0
        %v881 = vsel %vm260, %v872, 0
        %v883 = vsel %vm267, %v876, 0
        %885 = vmatpush.msra.mxu0 0.0
        %886 = vmatpush.msra.mxu0 0.0
        %887 = vmatpush.msra.mxu0 0.0
        %888 = vmatpush.msra.mxu0 0.0
        %889 = vmatpush.msra.mxu0 0.0
        %890 = vmatpush.msra.mxu0 0.0
        %891 = vmatpush.msra.mxu0 0.0
        %892 = vmatpush.msra.mxu0 0.0
        %893 = vmatpush.msra.mxu0 0.0
        %894 = vmatpush.msra.mxu0 0.0
        %895 = vmatpush.msra.mxu0 0.0
        %896 = vmatpush.msra.mxu0 0.0
        %897 = vmatpush.msra.mxu0 0.0
        %898 = vmatpush.msra.mxu0 0.0
        %899 = vmatpush.msra.mxu0 0.0
        %900 = vmatpush.msra.mxu0 %v883
        %901 = vmatmul.f32.gmra.mxu0 %v878
        %v902 = vpop.f32.mrf.mxu0
        %v903 = vadd.f32 %v874, %v902
        %904 = vmatmul.f32.gmra.mxu0 %v881
        %v905 = vpop.f32.mrf.mxu0
        %v906 = vadd.f32 %v874, %v905
        %907 = vdwg.mxu0
        %v908 = vmax.f32 %v903, 0.0
        %v909 = vmax.f32 %v906, 0.0
        %v910 = vld [vmem:[%s2] sm:$0xff]
        %v911 = vld [vmem:[%s2 + $0x8] sm:$0xff]
        %v912 = vld [vmem:[%s3 + $0x6] sm:$0x1]
        %v913 = vperm.slane %v912, 0
        %916 = vrot.lane.b32.xlu0 %v910, 92
        %v917 = vpop.permute.xlu0 %916
        %918 = vrot.lane.b32.xlu0 %v911, 92
        %v919 = vpop.permute.xlu0 %918
        %vm922 = vcmask 130048
        %v924 = vsel %vm922, %v908, 0
        %v927 = vsel %vm922, %v909, 0
        %929 = vmatpush.msra.mxu0 0.0
        %930 = vmatpush.msra.mxu0 0.0
        %931 = vmatpush.msra.mxu0 0.0
        %932 = vmatpush.msra.mxu0 0.0
        %933 = vmatpush.msra.mxu0 0.0
        %934 = vmatpush.msra.mxu0 0.0
        %935 = vmatpush.msra.mxu0 0.0
        %936 = vmatpush.msra.mxu0 0.0
        %937 = vmatpush.msra.mxu0 0.0
        %938 = vmatpush.msra.mxu0 0.0
        %939 = vmatpush.msra.mxu0 0.0
        %940 = vmatpush.msra.mxu0 0.0
        %941 = vmatpush.msra.mxu0 0.0
        %942 = vmatpush.msra.mxu0 0.0
        %943 = vmatpush.msra.mxu0 %v919
        %944 = vmatpush.msra.mxu0 %v917
        %945 = vmatmul.f32.gmra.mxu0 %v924
        %v946 = vpop.f32.mrf.mxu0
        %v947 = vadd.f32 %v913, %v946
        %948 = vmatmul.f32.gmra.mxu0 %v927
        %v949 = vpop.f32.mrf.mxu0
        %v950 = vadd.f32 %v913, %v949
        %951 = vdwg.mxu0
        %v952 = vadd.f32 %v871, %v947
        %v953 = vadd.f32 %v872, %v950
        %v954 = vsel %vm260, %v952, 0.0
        %955 = vadd.xlane.f32.xlu0 %v954
        %v956 = vpop.xlane.xlu0 %955
        %v957 = vsel %vm816, %v953, 0.0
        %958 = vadd.xlane.f32.xlu0 %v957
        %v959 = vpop.xlane.xlu0 %958
        %v960 = vmul.f32 %v956, %v826
        %v961 = vmul.f32 %v959, %v826
        %v962 = vsub.f32 %v952, %v960
        %v963 = vsub.f32 %v953, %v961
        %v964 = vmul.f32 %v962, %v962
        %v965 = vmul.f32 %v963, %v963
        %v966 = vsel %vm260, %v964, 0.0
        %967 = vadd.xlane.f32.xlu0 %v966
        %v968 = vpop.xlane.xlu0 %967
        %v969 = vsel %vm816, %v965, 0.0
        %970 = vadd.xlane.f32.xlu0 %v969
        %v971 = vpop.xlane.xlu0 %970
        %v972 = vmul.f32 %v968, %v826
        %v973 = vmul.f32 %v971, %v826
        %v974 = vadd.f32 %v972, 1e-05
        %v975 = vadd.f32 %v973, 1e-05
        %v976 = vrsqrt.pop %v974
        %v977 = vmul.f32 %v976, %v974
        %v978 = vmul.f32 %v977, %v976
        %v979 = vmul.f32 0.5, %v978
        %v980 = vsub.f32 1.5, %v979
        %v981 = vmul.f32 %v976, %v980
        %vm982 = vweird.f32 %v974
        %vm983 = vweird.f32 %v976
        %vm984 = vmor %vm982, %vm983
        %v985 = vsel %vm984, %v976, %v981
        %v986 = vrsqrt.pop %v975
        %v987 = vmul.f32 %v986, %v975
        %v988 = vmul.f32 %v987, %v986
        %v989 = vmul.f32 0.5, %v988
        %v990 = vsub.f32 1.5, %v989
        %v991 = vmul.f32 %v986, %v990
        %vm992 = vweird.f32 %v975
        %vm993 = vweird.f32 %v986
        %vm994 = vmor %vm992, %vm993
        %v995 = vsel %vm994, %v986, %v991
        %v996 = vmul.f32 %v962, %v985
        %v997 = vmul.f32 %v963, %v995
        %v998 = vld [vmem:[%s3 + $0x7] sm:$0x1]
        %v999 = vperm.slane %v998, 0
        %v1000 = vmul.f32 %v996, %v999
        %v1001 = vmul.f32 %v997, %v999
        %v1002 = vld [vmem:[%s3 + $0x8] sm:$0x1]
        %v1003 = vperm.slane %v1002, 0
        %v1004 = vadd.f32 %v1000, %v1003
        %v1005 = vadd.f32 %v1001, %v1003
        %v1006 = vld [vmem:[%s202] sm:$0x1]
        %1007 = vxpose.xlu0.b32.start [1/16] %v1006, 128
        %1008 = vxpose.xlu0.b32.cont [2/16] 0.0, 128
        %1009 = vxpose.xlu0.b32.cont [3/16] 0.0, 128
        %1010 = vxpose.xlu0.b32.cont [4/16] 0.0, 128
        %1011 = vxpose.xlu0.b32.cont [5/16] 0.0, 128
        %1012 = vxpose.xlu0.b32.cont [6/16] 0.0, 128
        %1013 = vxpose.xlu0.b32.cont [7/16] 0.0, 128
        %1014 = vxpose.xlu0.b32.cont [8/16] 0.0, 128
        %1015 = vxpose.xlu0.b32.cont [9/16] 0.0, 128
        %1016 = vxpose.xlu0.b32.cont [10/16] 0.0, 128
        %1017 = vxpose.xlu0.b32.cont [11/16] 0.0, 128
        %1018 = vxpose.xlu0.b32.cont [12/16] 0.0, 128
        %1019 = vxpose.xlu0.b32.cont [13/16] 0.0, 128
        %1020 = vxpose.xlu0.b32.cont [14/16] 0.0, 128
        %1021 = vxpose.xlu0.b32.cont [15/16] 0.0, 128
        %1022 = vxpose.xlu0.b32.end [16/16] 0.0, 128
        %v1023 = vpop.trf.xlu0
        %v1024 = vpop.trf.xlu0
        %v1025 = vpop.trf.xlu0
        %v1026 = vpop.trf.xlu0
        %v1027 = vpop.trf.xlu0
        %v1028 = vpop.trf.xlu0
        %v1029 = vpop.trf.xlu0
        %v1030 = vpop.trf.xlu0
        %v1031 = vpop.trf.xlu0
        %v1032 = vpop.trf.xlu0
        %v1033 = vpop.trf.xlu0
        %v1034 = vpop.trf.xlu0
        %v1035 = vpop.trf.xlu0
        %v1036 = vpop.trf.xlu0
        %v1037 = vpop.trf.xlu0
        %v1038 = vpop.trf.xlu0
        %1040 = vset.pattern.permute.xlu0 0
        %1041 = vperm.xlu0 %1040, %v1023
        %v1042 = vpop.permute.xlu0 %1041
        %1045 = vset.pattern.permute.xlu0 0
        %1046 = vperm.xlu0 %1045, %v1024
        %v1047 = vpop.permute.xlu0 %1046
        %v1049 = vmul.f32 %v1042, %v249
        %v1050 = vmul.f32 %v1047, %v249
        %v1051 = vadd.f32 %v1049, %v204
        %v1052 = vadd.f32 %v1050, %v205
        %v1053 = vld [vmem:[%s3 + $0x9] sm:$0x1]
        %v1054 = vperm.slane %v1053, 0
        %1055 = vrot.lane.b32.xlu0 %v254, 88
        %v1056 = vpop.permute.xlu0 %1055
        %v1058 = vsel %vm260, %v1051, 0
        %v1061 = vsel %vm260, %v1052, 0
        %v1063 = vsel %vm267, %v1056, 0
        %1065 = vmatpush.msra.mxu0 0.0
        %1066 = vmatpush.msra.mxu0 0.0
        %1067 = vmatpush.msra.mxu0 0.0
        %1068 = vmatpush.msra.mxu0 0.0
        %1069 = vmatpush.msra.mxu0 0.0
        %1070 = vmatpush.msra.mxu0 0.0
        %1071 = vmatpush.msra.mxu0 0.0
        %1072 = vmatpush.msra.mxu0 0.0
        %1073 = vmatpush.msra.mxu0 0.0
        %1074 = vmatpush.msra.mxu0 0.0
        %1075 = vmatpush.msra.mxu0 0.0
        %1076 = vmatpush.msra.mxu0 0.0
        %1077 = vmatpush.msra.mxu0 0.0
        %1078 = vmatpush.msra.mxu0 0.0
        %1079 = vmatpush.msra.mxu0 0.0
        %1080 = vmatpush.msra.mxu0 %v1063
        %1081 = vmatmul.f32.gmra.mxu0 %v1058
        %v1082 = vpop.f32.mrf.mxu0
        %v1083 = vadd.f32 %v1054, %v1082
        %1084 = vmatmul.f32.gmra.mxu0 %v1061
        %v1085 = vpop.f32.mrf.mxu0
        %v1086 = vadd.f32 %v1054, %v1085
        %1087 = vdwg.mxu0
        %1088 = vxpose.xlu0.b32.start [1/16] %v1083, 128
        %1089 = vxpose.xlu0.b32.cont [2/16] %v1086, 128
        %1090 = vxpose.xlu0.b32.cont [3/16] 0.0, 128
        %1091 = vxpose.xlu0.b32.cont [4/16] 0.0, 128
        %1092 = vxpose.xlu0.b32.cont [5/16] 0.0, 128
        %1093 = vxpose.xlu0.b32.cont [6/16] 0.0, 128
        %1094 = vxpose.xlu0.b32.cont [7/16] 0.0, 128
        %1095 = vxpose.xlu0.b32.cont [8/16] 0.0, 128
        %1096 = vxpose.xlu0.b32.cont [9/16] 0.0, 128
        %1097 = vxpose.xlu0.b32.cont [10/16] 0.0, 128
        %1098 = vxpose.xlu0.b32.cont [11/16] 0.0, 128
        %1099 = vxpose.xlu0.b32.cont [12/16] 0.0, 128
        %1100 = vxpose.xlu0.b32.cont [13/16] 0.0, 128
        %1101 = vxpose.xlu0.b32.cont [14/16] 0.0, 128
        %1102 = vxpose.xlu0.b32.cont [15/16] 0.0, 128
        %1103 = vxpose.xlu0.b32.end [16/16] 0.0, 128
        %v1104 = vpop.trf.xlu0
        %v1105 = vpop.trf.xlu0
        %v1106 = vpop.trf.xlu0
        %v1107 = vpop.trf.xlu0
        %v1108 = vpop.trf.xlu0
        %v1109 = vpop.trf.xlu0
        %v1110 = vpop.trf.xlu0
        %v1111 = vpop.trf.xlu0
        %v1112 = vpop.trf.xlu0
        %v1113 = vpop.trf.xlu0
        %v1114 = vpop.trf.xlu0
        %v1115 = vpop.trf.xlu0
        %v1116 = vpop.trf.xlu0
        %v1117 = vpop.trf.xlu0
        %v1118 = vpop.trf.xlu0
        %v1119 = vpop.trf.xlu0
        %1122 = vrot.lane.b32.xlu0 %v1083, 124
        %v1123 = vpop.permute.xlu0 %1122
        %1124 = vrot.lane.b32.xlu0 %v1086, 124
        %v1125 = vpop.permute.xlu0 %1124
        %1128 = vxpose.xlu0.b32.start [1/16] %v1123, 128
        %1129 = vxpose.xlu0.b32.cont [2/16] %v1125, 128
        %1130 = vxpose.xlu0.b32.cont [3/16] 0.0, 128
        %1131 = vxpose.xlu0.b32.cont [4/16] 0.0, 128
        %1132 = vxpose.xlu0.b32.cont [5/16] 0.0, 128
        %1133 = vxpose.xlu0.b32.cont [6/16] 0.0, 128
        %1134 = vxpose.xlu0.b32.cont [7/16] 0.0, 128
        %1135 = vxpose.xlu0.b32.cont [8/16] 0.0, 128
        %1136 = vxpose.xlu0.b32.cont [9/16] 0.0, 128
        %1137 = vxpose.xlu0.b32.cont [10/16] 0.0, 128
        %1138 = vxpose.xlu0.b32.cont [11/16] 0.0, 128
        %1139 = vxpose.xlu0.b32.cont [12/16] 0.0, 128
        %1140 = vxpose.xlu0.b32.cont [13/16] 0.0, 128
        %1141 = vxpose.xlu0.b32.cont [14/16] 0.0, 128
        %1142 = vxpose.xlu0.b32.cont [15/16] 0.0, 128
        %1143 = vxpose.xlu0.b32.end [16/16] 0.0, 128
        %v1144 = vpop.trf.xlu0
        %v1145 = vpop.trf.xlu0
        %v1146 = vpop.trf.xlu0
        %v1147 = vpop.trf.xlu0
        %v1148 = vpop.trf.xlu0
        %v1149 = vpop.trf.xlu0
        %v1150 = vpop.trf.xlu0
        %v1151 = vpop.trf.xlu0
        %v1152 = vpop.trf.xlu0
        %v1153 = vpop.trf.xlu0
        %v1154 = vpop.trf.xlu0
        %v1155 = vpop.trf.xlu0
        %v1156 = vpop.trf.xlu0
        %v1157 = vpop.trf.xlu0
        %v1158 = vpop.trf.xlu0
        %v1159 = vpop.trf.xlu0
        %1160 = vrot.lane.b32.xlu0 %v1083, 120
        %v1161 = vpop.permute.xlu0 %1160
        %1162 = vrot.lane.b32.xlu0 %v1086, 120
        %v1163 = vpop.permute.xlu0 %1162
        %1166 = vxpose.xlu0.b32.start [1/16] %v1161, 128
        %1167 = vxpose.xlu0.b32.cont [2/16] %v1163, 128
        %1168 = vxpose.xlu0.b32.cont [3/16] 0.0, 128
        %1169 = vxpose.xlu0.b32.cont [4/16] 0.0, 128
        %1170 = vxpose.xlu0.b32.cont [5/16] 0.0, 128
        %1171 = vxpose.xlu0.b32.cont [6/16] 0.0, 128
        %1172 = vxpose.xlu0.b32.cont [7/16] 0.0, 128
        %1173 = vxpose.xlu0.b32.cont [8/16] 0.0, 128
        %1174 = vxpose.xlu0.b32.cont [9/16] 0.0, 128
        %1175 = vxpose.xlu0.b32.cont [10/16] 0.0, 128
        %1176 = vxpose.xlu0.b32.cont [11/16] 0.0, 128
        %1177 = vxpose.xlu0.b32.cont [12/16] 0.0, 128
        %1178 = vxpose.xlu0.b32.cont [13/16] 0.0, 128
        %1179 = vxpose.xlu0.b32.cont [14/16] 0.0, 128
        %1180 = vxpose.xlu0.b32.cont [15/16] 0.0, 128
        %1181 = vxpose.xlu0.b32.end [16/16] 0.0, 128
        %v1182 = vpop.trf.xlu0
        %v1183 = vpop.trf.xlu0
        %v1184 = vpop.trf.xlu0
        %v1185 = vpop.trf.xlu0
        %v1186 = vpop.trf.xlu0
        %v1187 = vpop.trf.xlu0
        %v1188 = vpop.trf.xlu0
        %v1189 = vpop.trf.xlu0
        %v1190 = vpop.trf.xlu0
        %v1191 = vpop.trf.xlu0
        %v1192 = vpop.trf.xlu0
        %v1193 = vpop.trf.xlu0
        %v1194 = vpop.trf.xlu0
        %v1195 = vpop.trf.xlu0
        %v1196 = vpop.trf.xlu0
        %v1197 = vpop.trf.xlu0
        %v1198 = vperm.slane %v1104, 0
        %v1199 = vlaneseq
        %v1200 = vshrl.u32 %v1199, 7
        %1202 = vset.pattern.permute.xlu0 %v1200
        %1203 = vperm.xlu0 %1202, %v1198
        %v1204 = vpop.permute.xlu0 %1203
        %v1205 = vlaneseq
        %v1206 = vshrl.u32 %v1205, 7
        %v1207 = vadd.s32 %v1206, 8
        %1208 = vset.pattern.permute.xlu0 %v1207
        %1209 = vperm.xlu0 %1208, %v1198
        %v1210 = vpop.permute.xlu0 %1209
        %v1211 = vperm.slane %v1104, 1
        %v1212 = vlaneseq
        %v1213 = vshrl.u32 %v1212, 7
        %1215 = vset.pattern.permute.xlu0 %v1213
        %1216 = vperm.xlu0 %1215, %v1211
        %v1217 = vpop.permute.xlu0 %1216
        %v1218 = vlaneseq
        %v1219 = vshrl.u32 %v1218, 7
        %v1220 = vadd.s32 %v1219, 8
        %1221 = vset.pattern.permute.xlu0 %v1220
        %1222 = vperm.xlu0 %1221, %v1211
        %v1223 = vpop.permute.xlu0 %1222
        %v1224 = vperm.slane %v1104, 2
        %v1225 = vlaneseq
        %v1226 = vshrl.u32 %v1225, 7
        %1228 = vset.pattern.permute.xlu0 %v1226
        %1229 = vperm.xlu0 %1228, %v1224
        %v1230 = vpop.permute.xlu0 %1229
        %v1231 = vlaneseq
        %v1232 = vshrl.u32 %v1231, 7
        %v1233 = vadd.s32 %v1232, 8
        %1234 = vset.pattern.permute.xlu0 %v1233
        %1235 = vperm.xlu0 %1234, %v1224
        %v1236 = vpop.permute.xlu0 %1235
        %v1237 = vperm.slane %v1104, 3
        %v1238 = vlaneseq
        %v1239 = vshrl.u32 %v1238, 7
        %1241 = vset.pattern.permute.xlu0 %v1239
        %1242 = vperm.xlu0 %1241, %v1237
        %v1243 = vpop.permute.xlu0 %1242
        %v1244 = vlaneseq
        %v1245 = vshrl.u32 %v1244, 7
        %v1246 = vadd.s32 %v1245, 8
        %1247 = vset.pattern.permute.xlu0 %v1246
        %1248 = vperm.xlu0 %1247, %v1237
        %v1249 = vpop.permute.xlu0 %1248
        %v1251 = vrot.slane %v1144, 1
        %v1252 = vrot.slane %v1144, 2
        %v1253 = vrot.slane %v1144, 3
        %v1254 = vperm.slane %v1144, 0
        %v1255 = vperm.slane %v1251, 0
        %v1256 = vperm.slane %v1252, 0
        %v1257 = vperm.slane %v1253, 0
        %v1262 = vmul.f32 %v1204, %v1254
        %v1263 = vmul.f32 %v1210, %v1254
        %v1264 = vmul.f32 %v1217, %v1255
        %v1265 = vmul.f32 %v1223, %v1255
        %v1266 = vmul.f32 %v1230, %v1256
        %v1267 = vmul.f32 %v1236, %v1256
        %v1268 = vmul.f32 %v1243, %v1257
        %v1269 = vmul.f32 %v1249, %v1257
        %v1270 = vsel %vm475, %v1262, -inf
        %1271 = vmax.xlane.f32.xlu0 %v1270
        %v1272 = vpop.xlane.xlu0 %1271
        %v1273 = vsel %vm479, %v1263, -inf
        %1274 = vmax.xlane.f32.xlu0 %v1273
        %v1275 = vpop.xlane.xlu0 %1274
        %v1276 = vsel %vm475, %v1264, -inf
        %1277 = vmax.xlane.f32.xlu0 %v1276
        %v1278 = vpop.xlane.xlu0 %1277
        %v1279 = vsel %vm479, %v1265, -inf
        %1280 = vmax.xlane.f32.xlu0 %v1279
        %v1281 = vpop.xlane.xlu0 %1280
        %v1282 = vsel %vm475, %v1266, -inf
        %1283 = vmax.xlane.f32.xlu0 %v1282
        %v1284 = vpop.xlane.xlu0 %1283
        %v1285 = vsel %vm479, %v1267, -inf
        %1286 = vmax.xlane.f32.xlu0 %v1285
        %v1287 = vpop.xlane.xlu0 %1286
        %v1288 = vsel %vm475, %v1268, -inf
        %1289 = vmax.xlane.f32.xlu0 %v1288
        %v1290 = vpop.xlane.xlu0 %1289
        %v1291 = vsel %vm479, %v1269, -inf
        %1292 = vmax.xlane.f32.xlu0 %v1291
        %v1293 = vpop.xlane.xlu0 %1292
        %v1294 = vsub.f32 %v1262, %v1272
        %v1295 = vsub.f32 %v1263, %v1275
        %v1296 = vsub.f32 %v1264, %v1278
        %v1297 = vsub.f32 %v1265, %v1281
        %v1298 = vsub.f32 %v1266, %v1284
        %v1299 = vsub.f32 %v1267, %v1287
        %v1300 = vsub.f32 %v1268, %v1290
        %v1301 = vsub.f32 %v1269, %v1293
        %v1302 = vmul.f32 %v1294, 1.442695
        %v1303 = vpow.pop %v1302
        %v1304 = vmul.f32 %v1295, 1.442695
        %v1305 = vpow.pop %v1304
        %v1306 = vmul.f32 %v1296, 1.442695
        %v1307 = vpow.pop %v1306
        %v1308 = vmul.f32 %v1297, 1.442695
        %v1309 = vpow.pop %v1308
        %v1310 = vmul.f32 %v1298, 1.442695
        %v1311 = vpow.pop %v1310
        %v1312 = vmul.f32 %v1299, 1.442695
        %v1313 = vpow.pop %v1312
        %v1314 = vmul.f32 %v1300, 1.442695
        %v1315 = vpow.pop %v1314
        %v1316 = vmul.f32 %v1301, 1.442695
        %v1317 = vpow.pop %v1316
        %v1318 = vsel %vm475, %v1303, 0.0
        %1319 = vadd.xlane.f32.xlu0 %v1318
        %v1320 = vpop.xlane.xlu0 %1319
        %v1321 = vsel %vm479, %v1305, 0.0
        %1322 = vadd.xlane.f32.xlu0 %v1321
        %v1323 = vpop.xlane.xlu0 %1322
        %v1324 = vsel %vm475, %v1307, 0.0
        %1325 = vadd.xlane.f32.xlu0 %v1324
        %v1326 = vpop.xlane.xlu0 %1325
        %v1327 = vsel %vm479, %v1309, 0.0
        %1328 = vadd.xlane.f32.xlu0 %v1327
        %v1329 = vpop.xlane.xlu0 %1328
        %v1330 = vsel %vm475, %v1311, 0.0
        %1331 = vadd.xlane.f32.xlu0 %v1330
        %v1332 = vpop.xlane.xlu0 %1331
        %v1333 = vsel %vm479, %v1313, 0.0
        %1334 = vadd.xlane.f32.xlu0 %v1333
        %v1335 = vpop.xlane.xlu0 %1334
        %v1336 = vsel %vm475, %v1315, 0.0
        %1337 = vadd.xlane.f32.xlu0 %v1336
        %v1338 = vpop.xlane.xlu0 %1337
        %v1339 = vsel %vm479, %v1317, 0.0
        %1340 = vadd.xlane.f32.xlu0 %v1339
        %v1341 = vpop.xlane.xlu0 %1340
        %v1342 = vrcp.pop %v1320
        %v1343 = vmul.f32 %v1320, %v1342
        %v1344 = vsub.f32 1.0, %v1343
        %v1345 = vmul.f32 %v1342, %v1344
        %v1346 = vadd.f32 %v1342, %v1345
        %vm1347 = vweird.f32 %v1320
        %vm1348 = vweird.f32 %v1342
        %vm1349 = vmor %vm1347, %vm1348
        %v1350 = vsel %vm1349, %v1342, %v1346
        %v1351 = vand.u32 2147483647, %v1320
        %vm1352 = vcmp.eq.f32.partialorder %v1351, 8.507059e+37
        %v1353 = vand.u32 %v1320, 2147483648
        %v1354 = vor.u32 1.1754944e-38, %v1353
        %v1355 = vsel %vm1352, %v1354, %v1350
        %v1356 = vmul.f32 %v1303, %v1355
        %v1357 = vrcp.pop %v1323
        %v1358 = vmul.f32 %v1323, %v1357
        %v1359 = vsub.f32 1.0, %v1358
        %v1360 = vmul.f32 %v1357, %v1359
        %v1361 = vadd.f32 %v1357, %v1360
        %vm1362 = vweird.f32 %v1323
        %vm1363 = vweird.f32 %v1357
        %vm1364 = vmor %vm1362, %vm1363
        %v1365 = vsel %vm1364, %v1357, %v1361
        %v1366 = vand.u32 2147483647, %v1323
        %vm1367 = vcmp.eq.f32.partialorder %v1366, 8.507059e+37
        %v1368 = vand.u32 %v1323, 2147483648
        %v1369 = vor.u32 1.1754944e-38, %v1368
        %v1370 = vsel %vm1367, %v1369, %v1365
        %v1371 = vmul.f32 %v1305, %v1370
        %v1372 = vrcp.pop %v1326
        %v1373 = vmul.f32 %v1326, %v1372
        %v1374 = vsub.f32 1.0, %v1373
        %v1375 = vmul.f32 %v1372, %v1374
        %v1376 = vadd.f32 %v1372, %v1375
        %vm1377 = vweird.f32 %v1326
        %vm1378 = vweird.f32 %v1372
        %vm1379 = vmor %vm1377, %vm1378
        %v1380 = vsel %vm1379, %v1372, %v1376
        %v1381 = vand.u32 2147483647, %v1326
        %vm1382 = vcmp.eq.f32.partialorder %v1381, 8.507059e+37
        %v1383 = vand.u32 %v1326, 2147483648
        %v1384 = vor.u32 1.1754944e-38, %v1383
        %v1385 = vsel %vm1382, %v1384, %v1380
        %v1386 = vmul.f32 %v1307, %v1385
        %v1387 = vrcp.pop %v1329
        %v1388 = vmul.f32 %v1329, %v1387
        %v1389 = vsub.f32 1.0, %v1388
        %v1390 = vmul.f32 %v1387, %v1389
        %v1391 = vadd.f32 %v1387, %v1390
        %vm1392 = vweird.f32 %v1329
        %vm1393 = vweird.f32 %v1387
        %vm1394 = vmor %vm1392, %vm1393
        %v1395 = vsel %vm1394, %v1387, %v1391
        %v1396 = vand.u32 2147483647, %v1329
        %vm1397 = vcmp.eq.f32.partialorder %v1396, 8.507059e+37
        %v1398 = vand.u32 %v1329, 2147483648
        %v1399 = vor.u32 1.1754944e-38, %v1398
        %v1400 = vsel %vm1397, %v1399, %v1395
        %v1401 = vmul.f32 %v1309, %v1400
        %v1402 = vrcp.pop %v1332
        %v1403 = vmul.f32 %v1332, %v1402
        %v1404 = vsub.f32 1.0, %v1403
        %v1405 = vmul.f32 %v1402, %v1404
        %v1406 = vadd.f32 %v1402, %v1405
        %vm1407 = vweird.f32 %v1332
        %vm1408 = vweird.f32 %v1402
        %vm1409 = vmor %vm1407, %vm1408
        %v1410 = vsel %vm1409, %v1402, %v1406
        %v1411 = vand.u32 2147483647, %v1332
        %vm1412 = vcmp.eq.f32.partialorder %v1411, 8.507059e+37
        %v1413 = vand.u32 %v1332, 2147483648
        %v1414 = vor.u32 1.1754944e-38, %v1413
        %v1415 = vsel %vm1412, %v1414, %v1410
        %v1416 = vmul.f32 %v1311, %v1415
        %v1417 = vrcp.pop %v1335
        %v1418 = vmul.f32 %v1335, %v1417
        %v1419 = vsub.f32 1.0, %v1418
        %v1420 = vmul.f32 %v1417, %v1419
        %v1421 = vadd.f32 %v1417, %v1420
        %vm1422 = vweird.f32 %v1335
        %vm1423 = vweird.f32 %v1417
        %vm1424 = vmor %vm1422, %vm1423
        %v1425 = vsel %vm1424, %v1417, %v1421
        %v1426 = vand.u32 2147483647, %v1335
        %vm1427 = vcmp.eq.f32.partialorder %v1426, 8.507059e+37
        %v1428 = vand.u32 %v1335, 2147483648
        %v1429 = vor.u32 1.1754944e-38, %v1428
        %v1430 = vsel %vm1427, %v1429, %v1425
        %v1431 = vmul.f32 %v1313, %v1430
        %v1432 = vrcp.pop %v1338
        %v1433 = vmul.f32 %v1338, %v1432
        %v1434 = vsub.f32 1.0, %v1433
        %v1435 = vmul.f32 %v1432, %v1434
        %v1436 = vadd.f32 %v1432, %v1435
        %vm1437 = vweird.f32 %v1338
        %vm1438 = vweird.f32 %v1432
        %vm1439 = vmor %vm1437, %vm1438
        %v1440 = vsel %vm1439, %v1432, %v1436
        %v1441 = vand.u32 2147483647, %v1338
        %vm1442 = vcmp.eq.f32.partialorder %v1441, 8.507059e+37
        %v1443 = vand.u32 %v1338, 2147483648
        %v1444 = vor.u32 1.1754944e-38, %v1443
        %v1445 = vsel %vm1442, %v1444, %v1440
        %v1446 = vmul.f32 %v1315, %v1445
        %v1447 = vrcp.pop %v1341
        %v1448 = vmul.f32 %v1341, %v1447
        %v1449 = vsub.f32 1.0, %v1448
        %v1450 = vmul.f32 %v1447, %v1449
        %v1451 = vadd.f32 %v1447, %v1450
        %vm1452 = vweird.f32 %v1341
        %vm1453 = vweird.f32 %v1447
        %vm1454 = vmor %vm1452, %vm1453
        %v1455 = vsel %vm1454, %v1447, %v1451
        %v1456 = vand.u32 2147483647, %v1341
        %vm1457 = vcmp.eq.f32.partialorder %v1456, 8.507059e+37
        %v1458 = vand.u32 %v1341, 2147483648
        %v1459 = vor.u32 1.1754944e-38, %v1458
        %v1460 = vsel %vm1457, %v1459, %v1455
        %v1461 = vmul.f32 %v1317, %v1460
        %v1463 = vrot.slane %v1182, 1
        %v1464 = vrot.slane %v1182, 2
        %v1465 = vrot.slane %v1182, 3
        %v1466 = vperm.slane %v1182, 0
        %v1467 = vperm.slane %v1463, 0
        %v1468 = vperm.slane %v1464, 0
        %v1469 = vperm.slane %v1465, 0
        %v1474 = vmul.f32 %v1356, %v1466
        %v1475 = vmul.f32 %v1371, %v1466
        %v1476 = vmul.f32 %v1386, %v1467
        %v1477 = vmul.f32 %v1401, %v1467
        %v1478 = vmul.f32 %v1416, %v1468
        %v1479 = vmul.f32 %v1431, %v1468
        %v1480 = vmul.f32 %v1446, %v1469
        %v1481 = vmul.f32 %v1461, %v1469
        %v1482 = vsel %vm475, %v1474, 0.0
        %1483 = vadd.xlane.f32.xlu0 %v1482
        %v1484 = vpop.xlane.xlu0 %1483
        %v1485 = vsel %vm479, %v1475, 0.0
        %1486 = vadd.xlane.f32.xlu0 %v1485
        %v1487 = vpop.xlane.xlu0 %1486
        %v1488 = vsel %vm475, %v1476, 0.0
        %1489 = vadd.xlane.f32.xlu0 %v1488
        %v1490 = vpop.xlane.xlu0 %1489
        %v1491 = vsel %vm479, %v1477, 0.0
        %1492 = vadd.xlane.f32.xlu0 %v1491
        %v1493 = vpop.xlane.xlu0 %1492
        %v1494 = vsel %vm475, %v1478, 0.0
        %1495 = vadd.xlane.f32.xlu0 %v1494
        %v1496 = vpop.xlane.xlu0 %1495
        %v1497 = vsel %vm479, %v1479, 0.0
        %1498 = vadd.xlane.f32.xlu0 %v1497
        %v1499 = vpop.xlane.xlu0 %1498
        %v1500 = vsel %vm475, %v1480, 0.0
        %1501 = vadd.xlane.f32.xlu0 %v1500
        %v1502 = vpop.xlane.xlu0 %1501
        %v1503 = vsel %vm479, %v1481, 0.0
        %1504 = vadd.xlane.f32.xlu0 %v1503
        %v1505 = vpop.xlane.xlu0 %1504
        %v1514 = vperm.slane %v1484, %v722
        %v1515 = vperm.slane %v1487, %v724
        %v1516 = vsel %vm726, %v1515, %v1514
        %v1517 = vperm.slane %v1490, %v722
        %v1518 = vperm.slane %v1493, %v724
        %v1519 = vsel %vm726, %v1518, %v1517
        %v1520 = vperm.slane %v1496, %v722
        %v1521 = vperm.slane %v1499, %v724
        %v1522 = vsel %vm726, %v1521, %v1520
        %v1523 = vperm.slane %v1502, %v722
        %v1524 = vperm.slane %v1505, %v724
        %v1525 = vsel %vm726, %v1524, %v1523
        %v1526 = vsel %vm737, %v1519, %v1516
        %v1527 = vsel %vm739, %v1522, %v1526
        %v1528 = vsel %vm741, %v1525, %v1527
        %1530 = vxpose.xlu0.b32.start [1/16] %v1528, 128
        %1531 = vxpose.xlu0.b32.cont [2/16] 0.0, 128
        %1532 = vxpose.xlu0.b32.cont [3/16] 0.0, 128
        %1533 = vxpose.xlu0.b32.cont [4/16] 0.0, 128
        %1534 = vxpose.xlu0.b32.cont [5/16] 0.0, 128
        %1535 = vxpose.xlu0.b32.cont [6/16] 0.0, 128
        %1536 = vxpose.xlu0.b32.cont [7/16] 0.0, 128
        %1537 = vxpose.xlu0.b32.cont [8/16] 0.0, 128
        %1538 = vxpose.xlu0.b32.cont [9/16] 0.0, 128
        %1539 = vxpose.xlu0.b32.cont [10/16] 0.0, 128
        %1540 = vxpose.xlu0.b32.cont [11/16] 0.0, 128
        %1541 = vxpose.xlu0.b32.cont [12/16] 0.0, 128
        %1542 = vxpose.xlu0.b32.cont [13/16] 0.0, 128
        %1543 = vxpose.xlu0.b32.cont [14/16] 0.0, 128
        %1544 = vxpose.xlu0.b32.cont [15/16] 0.0, 128
        %1545 = vxpose.xlu0.b32.end [16/16] 0.0, 128
        %v1546 = vpop.trf.xlu0
        %v1547 = vpop.trf.xlu0
        %v1548 = vpop.trf.xlu0
        %v1549 = vpop.trf.xlu0
        %v1550 = vpop.trf.xlu0
        %v1551 = vpop.trf.xlu0
        %v1552 = vpop.trf.xlu0
        %v1553 = vpop.trf.xlu0
        %v1554 = vpop.trf.xlu0
        %v1555 = vpop.trf.xlu0
        %v1556 = vpop.trf.xlu0
        %v1557 = vpop.trf.xlu0
        %v1558 = vpop.trf.xlu0
        %v1559 = vpop.trf.xlu0
        %v1560 = vpop.trf.xlu0
        %v1561 = vpop.trf.xlu0
        %v1562 = vld [vmem:[%s3 + $0xa] sm:$0x1]
        %v1563 = vperm.slane %v1562, 0
        %1564 = vrot.lane.b32.xlu0 %v254, 76
        %v1565 = vpop.permute.xlu0 %1564
        %v1567 = vsel %vm260, %v1546, 0
        %v1570 = vsel %vm260, %v1547, 0
        %v1572 = vsel %vm267, %v1565, 0
        %1574 = vmatpush.msra.mxu0 0.0
        %1575 = vmatpush.msra.mxu0 0.0
        %1576 = vmatpush.msra.mxu0 0.0
        %1577 = vmatpush.msra.mxu0 0.0
        %1578 = vmatpush.msra.mxu0 0.0
        %1579 = vmatpush.msra.mxu0 0.0
        %1580 = vmatpush.msra.mxu0 0.0
        %1581 = vmatpush.msra.mxu0 0.0
        %1582 = vmatpush.msra.mxu0 0.0
        %1583 = vmatpush.msra.mxu0 0.0
        %1584 = vmatpush.msra.mxu0 0.0
        %1585 = vmatpush.msra.mxu0 0.0
        %1586 = vmatpush.msra.mxu0 0.0
        %1587 = vmatpush.msra.mxu0 0.0
        %1588 = vmatpush.msra.mxu0 0.0
        %1589 = vmatpush.msra.mxu0 %v1572
        %1590 = vmatmul.f32.gmra.mxu0 %v1567
        %v1591 = vpop.f32.mrf.mxu0
        %v1592 = vadd.f32 %v1563, %v1591
        %1593 = vmatmul.f32.gmra.mxu0 %v1570
        %v1594 = vpop.f32.mrf.mxu0
        %v1595 = vadd.f32 %v1563, %v1594
        %1596 = vdwg.mxu0
        %v1597 = vadd.f32 %v1051, %v1592
        %v1598 = vadd.f32 %v1052, %v1595
        %v1599 = vsel %vm260, %v1597, 0.0
        %1600 = vadd.xlane.f32.xlu0 %v1599
        %v1601 = vpop.xlane.xlu0 %1600
        %v1602 = vsel %vm816, %v1598, 0.0
        %1603 = vadd.xlane.f32.xlu0 %v1602
        %v1604 = vpop.xlane.xlu0 %1603
        %v1605 = vmul.f32 %v1601, %v826
        %v1606 = vmul.f32 %v1604, %v826
        %v1607 = vsub.f32 %v1597, %v1605
        %v1608 = vsub.f32 %v1598, %v1606
        %v1609 = vmul.f32 %v1607, %v1607
        %v1610 = vmul.f32 %v1608, %v1608
        %v1611 = vsel %vm260, %v1609, 0.0
        %1612 = vadd.xlane.f32.xlu0 %v1611
        %v1613 = vpop.xlane.xlu0 %1612
        %v1614 = vsel %vm816, %v1610, 0.0
        %1615 = vadd.xlane.f32.xlu0 %v1614
        %v1616 = vpop.xlane.xlu0 %1615
        %v1617 = vmul.f32 %v1613, %v826
        %v1618 = vmul.f32 %v1616, %v826
        %v1619 = vadd.f32 %v1617, 1e-05
        %v1620 = vadd.f32 %v1618, 1e-05
        %v1621 = vrsqrt.pop %v1619
        %v1622 = vmul.f32 %v1621, %v1619
        %v1623 = vmul.f32 %v1622, %v1621
        %v1624 = vmul.f32 0.5, %v1623
        %v1625 = vsub.f32 1.5, %v1624
        %v1626 = vmul.f32 %v1621, %v1625
        %vm1627 = vweird.f32 %v1619
        %vm1628 = vweird.f32 %v1621
        %vm1629 = vmor %vm1627, %vm1628
        %v1630 = vsel %vm1629, %v1621, %v1626
        %v1631 = vrsqrt.pop %v1620
        %v1632 = vmul.f32 %v1631, %v1620
        %v1633 = vmul.f32 %v1632, %v1631
        %v1634 = vmul.f32 0.5, %v1633
        %v1635 = vsub.f32 1.5, %v1634
        %v1636 = vmul.f32 %v1631, %v1635
        %vm1637 = vweird.f32 %v1620
        %vm1638 = vweird.f32 %v1631
        %vm1639 = vmor %vm1637, %vm1638
        %v1640 = vsel %vm1639, %v1631, %v1636
        %v1641 = vmul.f32 %v1607, %v1630
        %v1642 = vmul.f32 %v1608, %v1640
        %v1643 = vld [vmem:[%s3 + $0xb] sm:$0x1]
        %v1644 = vperm.slane %v1643, 0
        %v1645 = vmul.f32 %v1641, %v1644
        %v1646 = vmul.f32 %v1642, %v1644
        %v1647 = vld [vmem:[%s3 + $0xc] sm:$0x1]
        %v1648 = vperm.slane %v1647, 0
        %v1649 = vadd.f32 %v1645, %v1648
        %v1650 = vadd.f32 %v1646, %v1648
        %v1651 = vld [vmem:[%s3 + $0xd] sm:$0x1]
        %v1652 = vperm.slane %v1651, 0
        %1653 = vrot.lane.b32.xlu0 %v254, 72
        %v1654 = vpop.permute.xlu0 %1653
        %v1656 = vsel %vm260, %v1649, 0
        %v1659 = vsel %vm260, %v1650, 0
        %v1661 = vsel %vm267, %v1654, 0
        %1663 = vmatpush.msra.mxu0 0.0
        %1664 = vmatpush.msra.mxu0 0.0
        %1665 = vmatpush.msra.mxu0 0.0
        %1666 = vmatpush.msra.mxu0 0.0
        %1667 = vmatpush.msra.mxu0 0.0
        %1668 = vmatpush.msra.mxu0 0.0
        %1669 = vmatpush.msra.mxu0 0.0
        %1670 = vmatpush.msra.mxu0 0.0
        %1671 = vmatpush.msra.mxu0 0.0
        %1672 = vmatpush.msra.mxu0 0.0
        %1673 = vmatpush.msra.mxu0 0.0
        %1674 = vmatpush.msra.mxu0 0.0
        %1675 = vmatpush.msra.mxu0 0.0
        %1676 = vmatpush.msra.mxu0 0.0
        %1677 = vmatpush.msra.mxu0 0.0
        %1678 = vmatpush.msra.mxu0 %v1661
        %1679 = vmatmul.f32.gmra.mxu0 %v1656
        %v1680 = vpop.f32.mrf.mxu0
        %v1681 = vadd.f32 %v1652, %v1680
        %1682 = vmatmul.f32.gmra.mxu0 %v1659
        %v1683 = vpop.f32.mrf.mxu0
        %v1684 = vadd.f32 %v1652, %v1683
        %1685 = vdwg.mxu0
        %v1686 = vld [vmem:[%s3 + $0xe] sm:$0x1]
        %v1687 = vperm.slane %v1686, 0
        %1688 = vrot.lane.b32.xlu0 %v254, 68
        %v1689 = vpop.permute.xlu0 %1688
        %v1691 = vsel %vm260, %v1004, 0
        %v1694 = vsel %vm260, %v1005, 0
        %v1696 = vsel %vm267, %v1689, 0
        %1698 = vmatpush.msra.mxu0 0.0
        %1699 = vmatpush.msra.mxu0 0.0
        %1700 = vmatpush.msra.mxu0 0.0
        %1701 = vmatpush.msra.mxu0 0.0
        %1702 = vmatpush.msra.mxu0 0.0
        %1703 = vmatpush.msra.mxu0 0.0
        %1704 = vmatpush.msra.mxu0 0.0
        %1705 = vmatpush.msra.mxu0 0.0
        %1706 = vmatpush.msra.mxu0 0.0
        %1707 = vmatpush.msra.mxu0 0.0
        %1708 = vmatpush.msra.mxu0 0.0
        %1709 = vmatpush.msra.mxu0 0.0
        %1710 = vmatpush.msra.mxu0 0.0
        %1711 = vmatpush.msra.mxu0 0.0
        %1712 = vmatpush.msra.mxu0 0.0
        %1713 = vmatpush.msra.mxu0 %v1696
        %1714 = vmatmul.f32.gmra.mxu0 %v1691
        %v1715 = vpop.f32.mrf.mxu0
        %v1716 = vadd.f32 %v1687, %v1715
        %1717 = vmatmul.f32.gmra.mxu0 %v1694
        %v1718 = vpop.f32.mrf.mxu0
        %v1719 = vadd.f32 %v1687, %v1718
        %1720 = vdwg.mxu0
        %1721 = vxpose.xlu0.b32.start [1/16] %v1681, 128
        %1722 = vxpose.xlu0.b32.cont [2/16] %v1684, 128
        %1723 = vxpose.xlu0.b32.cont [3/16] 0.0, 128
        %1724 = vxpose.xlu0.b32.cont [4/16] 0.0, 128
        %1725 = vxpose.xlu0.b32.cont [5/16] 0.0, 128
        %1726 = vxpose.xlu0.b32.cont [6/16] 0.0, 128
        %1727 = vxpose.xlu0.b32.cont [7/16] 0.0, 128
        %1728 = vxpose.xlu0.b32.cont [8/16] 0.0, 128
        %1729 = vxpose.xlu0.b32.cont [9/16] 0.0, 128
        %1730 = vxpose.xlu0.b32.cont [10/16] 0.0, 128
        %1731 = vxpose.xlu0.b32.cont [11/16] 0.0, 128
        %1732 = vxpose.xlu0.b32.cont [12/16] 0.0, 128
        %1733 = vxpose.xlu0.b32.cont [13/16] 0.0, 128
        %1734 = vxpose.xlu0.b32.cont [14/16] 0.0, 128
        %1735 = vxpose.xlu0.b32.cont [15/16] 0.0, 128
        %1736 = vxpose.xlu0.b32.end [16/16] 0.0, 128
        %v1737 = vpop.trf.xlu0
        %v1738 = vpop.trf.xlu0
        %v1739 = vpop.trf.xlu0
        %v1740 = vpop.trf.xlu0
        %v1741 = vpop.trf.xlu0
        %v1742 = vpop.trf.xlu0
        %v1743 = vpop.trf.xlu0
        %v1744 = vpop.trf.xlu0
        %v1745 = vpop.trf.xlu0
        %v1746 = vpop.trf.xlu0
        %v1747 = vpop.trf.xlu0
        %v1748 = vpop.trf.xlu0
        %v1749 = vpop.trf.xlu0
        %v1750 = vpop.trf.xlu0
        %v1751 = vpop.trf.xlu0
        %v1752 = vpop.trf.xlu0
        %1753 = vxpose.xlu0.b32.start [1/16] %v1716, 128
        %1754 = vxpose.xlu0.b32.cont [2/16] %v1719, 128
        %1755 = vxpose.xlu0.b32.cont [3/16] 0.0, 128
        %1756 = vxpose.xlu0.b32.cont [4/16] 0.0, 128
        %1757 = vxpose.xlu0.b32.cont [5/16] 0.0, 128
        %1758 = vxpose.xlu0.b32.cont [6/16] 0.0, 128
        %1759 = vxpose.xlu0.b32.cont [7/16] 0.0, 128
        %1760 = vxpose.xlu0.b32.cont [8/16] 0.0, 128
        %1761 = vxpose.xlu0.b32.cont [9/16] 0.0, 128
        %1762 = vxpose.xlu0.b32.cont [10/16] 0.0, 128
        %1763 = vxpose.xlu0.b32.cont [11/16] 0.0, 128
        %1764 = vxpose.xlu0.b32.cont [12/16] 0.0, 128
        %1765 = vxpose.xlu0.b32.cont [13/16] 0.0, 128
        %1766 = vxpose.xlu0.b32.cont [14/16] 0.0, 128
        %1767 = vxpose.xlu0.b32.cont [15/16] 0.0, 128
        %1768 = vxpose.xlu0.b32.end [16/16] 0.0, 128
        %v1769 = vpop.trf.xlu0
        %v1770 = vpop.trf.xlu0
        %v1771 = vpop.trf.xlu0
        %v1772 = vpop.trf.xlu0
        %v1773 = vpop.trf.xlu0
        %v1774 = vpop.trf.xlu0
        %v1775 = vpop.trf.xlu0
        %v1776 = vpop.trf.xlu0
        %v1777 = vpop.trf.xlu0
        %v1778 = vpop.trf.xlu0
        %v1779 = vpop.trf.xlu0
        %v1780 = vpop.trf.xlu0
        %v1781 = vpop.trf.xlu0
        %v1782 = vpop.trf.xlu0
        %v1783 = vpop.trf.xlu0
        %v1784 = vpop.trf.xlu0
        %1787 = vrot.lane.b32.xlu0 %v1716, 124
        %v1788 = vpop.permute.xlu0 %1787
        %1789 = vrot.lane.b32.xlu0 %v1719, 124
        %v1790 = vpop.permute.xlu0 %1789
        %1793 = vxpose.xlu0.b32.start [1/16] %v1788, 128
        %1794 = vxpose.xlu0.b32.cont [2/16] %v1790, 128
        %1795 = vxpose.xlu0.b32.cont [3/16] 0.0, 128
        %1796 = vxpose.xlu0.b32.cont [4/16] 0.0, 128
        %1797 = vxpose.xlu0.b32.cont [5/16] 0.0, 128
        %1798 = vxpose.xlu0.b32.cont [6/16] 0.0, 128
        %1799 = vxpose.xlu0.b32.cont [7/16] 0.0, 128
        %1800 = vxpose.xlu0.b32.cont [8/16] 0.0, 128
        %1801 = vxpose.xlu0.b32.cont [9/16] 0.0, 128
        %1802 = vxpose.xlu0.b32.cont [10/16] 0.0, 128
        %1803 = vxpose.xlu0.b32.cont [11/16] 0.0, 128
        %1804 = vxpose.xlu0.b32.cont [12/16] 0.0, 128
        %1805 = vxpose.xlu0.b32.cont [13/16] 0.0, 128
        %1806 = vxpose.xlu0.b32.cont [14/16] 0.0, 128
        %1807 = vxpose.xlu0.b32.cont [15/16] 0.0, 128
        %1808 = vxpose.xlu0.b32.end [16/16] 0.0, 128
        %v1809 = vpop.trf.xlu0
        %v1810 = vpop.trf.xlu0
        %v1811 = vpop.trf.xlu0
        %v1812 = vpop.trf.xlu0
        %v1813 = vpop.trf.xlu0
        %v1814 = vpop.trf.xlu0
        %v1815 = vpop.trf.xlu0
        %v1816 = vpop.trf.xlu0
        %v1817 = vpop.trf.xlu0
        %v1818 = vpop.trf.xlu0
        %v1819 = vpop.trf.xlu0
        %v1820 = vpop.trf.xlu0
        %v1821 = vpop.trf.xlu0
        %v1822 = vpop.trf.xlu0
        %v1823 = vpop.trf.xlu0
        %v1824 = vpop.trf.xlu0
        %v1825 = vperm.slane %v1737, 0
        %v1826 = vlaneseq
        %v1827 = vshrl.u32 %v1826, 7
        %1829 = vset.pattern.permute.xlu0 %v1827
        %1830 = vperm.xlu0 %1829, %v1825
        %v1831 = vpop.permute.xlu0 %1830
        %v1832 = vlaneseq
        %v1833 = vshrl.u32 %v1832, 7
        %v1834 = vadd.s32 %v1833, 8
        %1835 = vset.pattern.permute.xlu0 %v1834
        %1836 = vperm.xlu0 %1835, %v1825
        %v1837 = vpop.permute.xlu0 %1836
        %v1838 = vperm.slane %v1737, 1
        %v1839 = vlaneseq
        %v1840 = vshrl.u32 %v1839, 7
        %1842 = vset.pattern.permute.xlu0 %v1840
        %1843 = vperm.xlu0 %1842, %v1838
        %v1844 = vpop.permute.xlu0 %1843
        %v1845 = vlaneseq
        %v1846 = vshrl.u32 %v1845, 7
        %v1847 = vadd.s32 %v1846, 8
        %1848 = vset.pattern.permute.xlu0 %v1847
        %1849 = vperm.xlu0 %1848, %v1838
        %v1850 = vpop.permute.xlu0 %1849
        %v1851 = vperm.slane %v1737, 2
        %v1852 = vlaneseq
        %v1853 = vshrl.u32 %v1852, 7
        %1855 = vset.pattern.permute.xlu0 %v1853
        %1856 = vperm.xlu0 %1855, %v1851
        %v1857 = vpop.permute.xlu0 %1856
        %v1858 = vlaneseq
        %v1859 = vshrl.u32 %v1858, 7
        %v1860 = vadd.s32 %v1859, 8
        %1861 = vset.pattern.permute.xlu0 %v1860
        %1862 = vperm.xlu0 %1861, %v1851
        %v1863 = vpop.permute.xlu0 %1862
        %v1864 = vperm.slane %v1737, 3
        %v1865 = vlaneseq
        %v1866 = vshrl.u32 %v1865, 7
        %1868 = vset.pattern.permute.xlu0 %v1866
        %1869 = vperm.xlu0 %1868, %v1864
        %v1870 = vpop.permute.xlu0 %1869
        %v1871 = vlaneseq
        %v1872 = vshrl.u32 %v1871, 7
        %v1873 = vadd.s32 %v1872, 8
        %1874 = vset.pattern.permute.xlu0 %v1873
        %1875 = vperm.xlu0 %1874, %v1864
        %v1876 = vpop.permute.xlu0 %1875
        %v1878 = vrot.slane %v1769, 1
        %v1879 = vrot.slane %v1769, 2
        %v1880 = vrot.slane %v1769, 3
        %v1881 = vperm.slane %v1769, 0
        %v1882 = vperm.slane %v1878, 0
        %v1883 = vperm.slane %v1879, 0
        %v1884 = vperm.slane %v1880, 0
        %v1889 = vmul.f32 %v1831, %v1881
        %v1890 = vmul.f32 %v1837, %v1881
        %v1891 = vmul.f32 %v1844, %v1882
        %v1892 = vmul.f32 %v1850, %v1882
        %v1893 = vmul.f32 %v1857, %v1883
        %v1894 = vmul.f32 %v1863, %v1883
        %v1895 = vmul.f32 %v1870, %v1884
        %v1896 = vmul.f32 %v1876, %v1884
        %v1897 = vsel %vm475, %v1889, -inf
        %1898 = vmax.xlane.f32.xlu0 %v1897
        %v1899 = vpop.xlane.xlu0 %1898
        %v1900 = vsel %vm479, %v1890, -inf
        %1901 = vmax.xlane.f32.xlu0 %v1900
        %v1902 = vpop.xlane.xlu0 %1901
        %v1903 = vsel %vm475, %v1891, -inf
        %1904 = vmax.xlane.f32.xlu0 %v1903
        %v1905 = vpop.xlane.xlu0 %1904
        %v1906 = vsel %vm479, %v1892, -inf
        %1907 = vmax.xlane.f32.xlu0 %v1906
        %v1908 = vpop.xlane.xlu0 %1907
        %v1909 = vsel %vm475, %v1893, -inf
        %1910 = vmax.xlane.f32.xlu0 %v1909
        %v1911 = vpop.xlane.xlu0 %1910
        %v1912 = vsel %vm479, %v1894, -inf
        %1913 = vmax.xlane.f32.xlu0 %v1912
        %v1914 = vpop.xlane.xlu0 %1913
        %v1915 = vsel %vm475, %v1895, -inf
        %1916 = vmax.xlane.f32.xlu0 %v1915
        %v1917 = vpop.xlane.xlu0 %1916
        %v1918 = vsel %vm479, %v1896, -inf
        %1919 = vmax.xlane.f32.xlu0 %v1918
        %v1920 = vpop.xlane.xlu0 %1919
        %v1921 = vsub.f32 %v1889, %v1899
        %v1922 = vsub.f32 %v1890, %v1902
        %v1923 = vsub.f32 %v1891, %v1905
        %v1924 = vsub.f32 %v1892, %v1908
        %v1925 = vsub.f32 %v1893, %v1911
        %v1926 = vsub.f32 %v1894, %v1914
        %v1927 = vsub.f32 %v1895, %v1917
        %v1928 = vsub.f32 %v1896, %v1920
        %v1929 = vmul.f32 %v1921, 1.442695
        %v1930 = vpow.pop %v1929
        %v1931 = vmul.f32 %v1922, 1.442695
        %v1932 = vpow.pop %v1931
        %v1933 = vmul.f32 %v1923, 1.442695
        %v1934 = vpow.pop %v1933
        %v1935 = vmul.f32 %v1924, 1.442695
        %v1936 = vpow.pop %v1935
        %v1937 = vmul.f32 %v1925, 1.442695
        %v1938 = vpow.pop %v1937
        %v1939 = vmul.f32 %v1926, 1.442695
        %v1940 = vpow.pop %v1939
        %v1941 = vmul.f32 %v1927, 1.442695
        %v1942 = vpow.pop %v1941
        %v1943 = vmul.f32 %v1928, 1.442695
        %v1944 = vpow.pop %v1943
        %v1945 = vsel %vm475, %v1930, 0.0
        %1946 = vadd.xlane.f32.xlu0 %v1945
        %v1947 = vpop.xlane.xlu0 %1946
        %v1948 = vsel %vm479, %v1932, 0.0
        %1949 = vadd.xlane.f32.xlu0 %v1948
        %v1950 = vpop.xlane.xlu0 %1949
        %v1951 = vsel %vm475, %v1934, 0.0
        %1952 = vadd.xlane.f32.xlu0 %v1951
        %v1953 = vpop.xlane.xlu0 %1952
        %v1954 = vsel %vm479, %v1936, 0.0
        %1955 = vadd.xlane.f32.xlu0 %v1954
        %v1956 = vpop.xlane.xlu0 %1955
        %v1957 = vsel %vm475, %v1938, 0.0
        %1958 = vadd.xlane.f32.xlu0 %v1957
        %v1959 = vpop.xlane.xlu0 %1958
        %v1960 = vsel %vm479, %v1940, 0.0
        %1961 = vadd.xlane.f32.xlu0 %v1960
        %v1962 = vpop.xlane.xlu0 %1961
        %v1963 = vsel %vm475, %v1942, 0.0
        %1964 = vadd.xlane.f32.xlu0 %v1963
        %v1965 = vpop.xlane.xlu0 %1964
        %v1966 = vsel %vm479, %v1944, 0.0
        %1967 = vadd.xlane.f32.xlu0 %v1966
        %v1968 = vpop.xlane.xlu0 %1967
        %v1969 = vrcp.pop %v1947
        %v1970 = vmul.f32 %v1947, %v1969
        %v1971 = vsub.f32 1.0, %v1970
        %v1972 = vmul.f32 %v1969, %v1971
        %v1973 = vadd.f32 %v1969, %v1972
        %vm1974 = vweird.f32 %v1947
        %vm1975 = vweird.f32 %v1969
        %vm1976 = vmor %vm1974, %vm1975
        %v1977 = vsel %vm1976, %v1969, %v1973
        %v1978 = vand.u32 2147483647, %v1947
        %vm1979 = vcmp.eq.f32.partialorder %v1978, 8.507059e+37
        %v1980 = vand.u32 %v1947, 2147483648
        %v1981 = vor.u32 1.1754944e-38, %v1980
        %v1982 = vsel %vm1979, %v1981, %v1977
        %v1983 = vmul.f32 %v1930, %v1982
        %v1984 = vrcp.pop %v1950
        %v1985 = vmul.f32 %v1950, %v1984
        %v1986 = vsub.f32 1.0, %v1985
        %v1987 = vmul.f32 %v1984, %v1986
        %v1988 = vadd.f32 %v1984, %v1987
        %vm1989 = vweird.f32 %v1950
        %vm1990 = vweird.f32 %v1984
        %vm1991 = vmor %vm1989, %vm1990
        %v1992 = vsel %vm1991, %v1984, %v1988
        %v1993 = vand.u32 2147483647, %v1950
        %vm1994 = vcmp.eq.f32.partialorder %v1993, 8.507059e+37
        %v1995 = vand.u32 %v1950, 2147483648
        %v1996 = vor.u32 1.1754944e-38, %v1995
        %v1997 = vsel %vm1994, %v1996, %v1992
        %v1998 = vmul.f32 %v1932, %v1997
        %v1999 = vrcp.pop %v1953
        %v2000 = vmul.f32 %v1953, %v1999
        %v2001 = vsub.f32 1.0, %v2000
        %v2002 = vmul.f32 %v1999, %v2001
        %v2003 = vadd.f32 %v1999, %v2002
        %vm2004 = vweird.f32 %v1953
        %vm2005 = vweird.f32 %v1999
        %vm2006 = vmor %vm2004, %vm2005
        %v2007 = vsel %vm2006, %v1999, %v2003
        %v2008 = vand.u32 2147483647, %v1953
        %vm2009 = vcmp.eq.f32.partialorder %v2008, 8.507059e+37
        %v2010 = vand.u32 %v1953, 2147483648
        %v2011 = vor.u32 1.1754944e-38, %v2010
        %v2012 = vsel %vm2009, %v2011, %v2007
        %v2013 = vmul.f32 %v1934, %v2012
        %v2014 = vrcp.pop %v1956
        %v2015 = vmul.f32 %v1956, %v2014
        %v2016 = vsub.f32 1.0, %v2015
        %v2017 = vmul.f32 %v2014, %v2016
        %v2018 = vadd.f32 %v2014, %v2017
        %vm2019 = vweird.f32 %v1956
        %vm2020 = vweird.f32 %v2014
        %vm2021 = vmor %vm2019, %vm2020
        %v2022 = vsel %vm2021, %v2014, %v2018
        %v2023 = vand.u32 2147483647, %v1956
        %vm2024 = vcmp.eq.f32.partialorder %v2023, 8.507059e+37
        %v2025 = vand.u32 %v1956, 2147483648
        %v2026 = vor.u32 1.1754944e-38, %v2025
        %v2027 = vsel %vm2024, %v2026, %v2022
        %v2028 = vmul.f32 %v1936, %v2027
        %v2029 = vrcp.pop %v1959
        %v2030 = vmul.f32 %v1959, %v2029
        %v2031 = vsub.f32 1.0, %v2030
        %v2032 = vmul.f32 %v2029, %v2031
        %v2033 = vadd.f32 %v2029, %v2032
        %vm2034 = vweird.f32 %v1959
        %vm2035 = vweird.f32 %v2029
        %vm2036 = vmor %vm2034, %vm2035
        %v2037 = vsel %vm2036, %v2029, %v2033
        %v2038 = vand.u32 2147483647, %v1959
        %vm2039 = vcmp.eq.f32.partialorder %v2038, 8.507059e+37
        %v2040 = vand.u32 %v1959, 2147483648
        %v2041 = vor.u32 1.1754944e-38, %v2040
        %v2042 = vsel %vm2039, %v2041, %v2037
        %v2043 = vmul.f32 %v1938, %v2042
        %v2044 = vrcp.pop %v1962
        %v2045 = vmul.f32 %v1962, %v2044
        %v2046 = vsub.f32 1.0, %v2045
        %v2047 = vmul.f32 %v2044, %v2046
        %v2048 = vadd.f32 %v2044, %v2047
        %vm2049 = vweird.f32 %v1962
        %vm2050 = vweird.f32 %v2044
        %vm2051 = vmor %vm2049, %vm2050
        %v2052 = vsel %vm2051, %v2044, %v2048
        %v2053 = vand.u32 2147483647, %v1962
        %vm2054 = vcmp.eq.f32.partialorder %v2053, 8.507059e+37
        %v2055 = vand.u32 %v1962, 2147483648
        %v2056 = vor.u32 1.1754944e-38, %v2055
        %v2057 = vsel %vm2054, %v2056, %v2052
        %v2058 = vmul.f32 %v1940, %v2057
        %v2059 = vrcp.pop %v1965
        %v2060 = vmul.f32 %v1965, %v2059
        %v2061 = vsub.f32 1.0, %v2060
        %v2062 = vmul.f32 %v2059, %v2061
        %v2063 = vadd.f32 %v2059, %v2062
        %vm2064 = vweird.f32 %v1965
        %vm2065 = vweird.f32 %v2059
        %vm2066 = vmor %vm2064, %vm2065
        %v2067 = vsel %vm2066, %v2059, %v2063
        %v2068 = vand.u32 2147483647, %v1965
        %vm2069 = vcmp.eq.f32.partialorder %v2068, 8.507059e+37
        %v2070 = vand.u32 %v1965, 2147483648
        %v2071 = vor.u32 1.1754944e-38, %v2070
        %v2072 = vsel %vm2069, %v2071, %v2067
        %v2073 = vmul.f32 %v1942, %v2072
        %v2074 = vrcp.pop %v1968
        %v2075 = vmul.f32 %v1968, %v2074
        %v2076 = vsub.f32 1.0, %v2075
        %v2077 = vmul.f32 %v2074, %v2076
        %v2078 = vadd.f32 %v2074, %v2077
        %vm2079 = vweird.f32 %v1968
        %vm2080 = vweird.f32 %v2074
        %vm2081 = vmor %vm2079, %vm2080
        %v2082 = vsel %vm2081, %v2074, %v2078
        %v2083 = vand.u32 2147483647, %v1968
        %vm2084 = vcmp.eq.f32.partialorder %v2083, 8.507059e+37
        %v2085 = vand.u32 %v1968, 2147483648
        %v2086 = vor.u32 1.1754944e-38, %v2085
        %v2087 = vsel %vm2084, %v2086, %v2082
        %v2088 = vmul.f32 %v1944, %v2087
        %v2090 = vrot.slane %v1809, 1
        %v2091 = vrot.slane %v1809, 2
        %v2092 = vrot.slane %v1809, 3
        %v2093 = vperm.slane %v1809, 0
        %v2094 = vperm.slane %v2090, 0
        %v2095 = vperm.slane %v2091, 0
        %v2096 = vperm.slane %v2092, 0
        %v2101 = vmul.f32 %v1983, %v2093
        %v2102 = vmul.f32 %v1998, %v2093
        %v2103 = vmul.f32 %v2013, %v2094
        %v2104 = vmul.f32 %v2028, %v2094
        %v2105 = vmul.f32 %v2043, %v2095
        %v2106 = vmul.f32 %v2058, %v2095
        %v2107 = vmul.f32 %v2073, %v2096
        %v2108 = vmul.f32 %v2088, %v2096
        %v2109 = vsel %vm475, %v2101, 0.0
        %2110 = vadd.xlane.f32.xlu0 %v2109
        %v2111 = vpop.xlane.xlu0 %2110
        %v2112 = vsel %vm479, %v2102, 0.0
        %2113 = vadd.xlane.f32.xlu0 %v2112
        %v2114 = vpop.xlane.xlu0 %2113
        %v2115 = vsel %vm475, %v2103, 0.0
        %2116 = vadd.xlane.f32.xlu0 %v2115
        %v2117 = vpop.xlane.xlu0 %2116
        %v2118 = vsel %vm479, %v2104, 0.0
        %2119 = vadd.xlane.f32.xlu0 %v2118
        %v2120 = vpop.xlane.xlu0 %2119
        %v2121 = vsel %vm475, %v2105, 0.0
        %2122 = vadd.xlane.f32.xlu0 %v2121
        %v2123 = vpop.xlane.xlu0 %2122
        %v2124 = vsel %vm479, %v2106, 0.0
        %2125 = vadd.xlane.f32.xlu0 %v2124
        %v2126 = vpop.xlane.xlu0 %2125
        %v2127 = vsel %vm475, %v2107, 0.0
        %2128 = vadd.xlane.f32.xlu0 %v2127
        %v2129 = vpop.xlane.xlu0 %2128
        %v2130 = vsel %vm479, %v2108, 0.0
        %2131 = vadd.xlane.f32.xlu0 %v2130
        %v2132 = vpop.xlane.xlu0 %2131
        %v2141 = vperm.slane %v2111, %v722
        %v2142 = vperm.slane %v2114, %v724
        %v2143 = vsel %vm726, %v2142, %v2141
        %v2144 = vperm.slane %v2117, %v722
        %v2145 = vperm.slane %v2120, %v724
        %v2146 = vsel %vm726, %v2145, %v2144
        %v2147 = vperm.slane %v2123, %v722
        %v2148 = vperm.slane %v2126, %v724
        %v2149 = vsel %vm726, %v2148, %v2147
        %v2150 = vperm.slane %v2129, %v722
        %v2151 = vperm.slane %v2132, %v724
        %v2152 = vsel %vm726, %v2151, %v2150
        %v2153 = vsel %vm737, %v2146, %v2143
        %v2154 = vsel %vm739, %v2149, %v2153
        %v2155 = vsel %vm741, %v2152, %v2154
        %2157 = vxpose.xlu0.b32.start [1/16] %v2155, 128
        %2158 = vxpose.xlu0.b32.cont [2/16] 0.0, 128
        %2159 = vxpose.xlu0.b32.cont [3/16] 0.0, 128
        %2160 = vxpose.xlu0.b32.cont [4/16] 0.0, 128
        %2161 = vxpose.xlu0.b32.cont [5/16] 0.0, 128
        %2162 = vxpose.xlu0.b32.cont [6/16] 0.0, 128
        %2163 = vxpose.xlu0.b32.cont [7/16] 0.0, 128
        %2164 = vxpose.xlu0.b32.cont [8/16] 0.0, 128
        %2165 = vxpose.xlu0.b32.cont [9/16] 0.0, 128
        %2166 = vxpose.xlu0.b32.cont [10/16] 0.0, 128
        %2167 = vxpose.xlu0.b32.cont [11/16] 0.0, 128
        %2168 = vxpose.xlu0.b32.cont [12/16] 0.0, 128
        %2169 = vxpose.xlu0.b32.cont [13/16] 0.0, 128
        %2170 = vxpose.xlu0.b32.cont [14/16] 0.0, 128
        %2171 = vxpose.xlu0.b32.cont [15/16] 0.0, 128
        %2172 = vxpose.xlu0.b32.end [16/16] 0.0, 128
        %v2173 = vpop.trf.xlu0
        %v2174 = vpop.trf.xlu0
        %v2175 = vpop.trf.xlu0
        %v2176 = vpop.trf.xlu0
        %v2177 = vpop.trf.xlu0
        %v2178 = vpop.trf.xlu0
        %v2179 = vpop.trf.xlu0
        %v2180 = vpop.trf.xlu0
        %v2181 = vpop.trf.xlu0
        %v2182 = vpop.trf.xlu0
        %v2183 = vpop.trf.xlu0
        %v2184 = vpop.trf.xlu0
        %v2185 = vpop.trf.xlu0
        %v2186 = vpop.trf.xlu0
        %v2187 = vpop.trf.xlu0
        %v2188 = vpop.trf.xlu0
        %v2189 = vld [vmem:[%s3 + $0xf] sm:$0x1]
        %v2190 = vperm.slane %v2189, 0
        %2191 = vrot.lane.b32.xlu0 %v254, 60
        %v2192 = vpop.permute.xlu0 %2191
        %v2194 = vsel %vm260, %v2173, 0
        %v2197 = vsel %vm260, %v2174, 0
        %v2199 = vsel %vm267, %v2192, 0
        %2201 = vmatpush.msra.mxu0 0.0
        %2202 = vmatpush.msra.mxu0 0.0
        %2203 = vmatpush.msra.mxu0 0.0
        %2204 = vmatpush.msra.mxu0 0.0
        %2205 = vmatpush.msra.mxu0 0.0
        %2206 = vmatpush.msra.mxu0 0.0
        %2207 = vmatpush.msra.mxu0 0.0
        %2208 = vmatpush.msra.mxu0 0.0
        %2209 = vmatpush.msra.mxu0 0.0
        %2210 = vmatpush.msra.mxu0 0.0
        %2211 = vmatpush.msra.mxu0 0.0
        %2212 = vmatpush.msra.mxu0 0.0
        %2213 = vmatpush.msra.mxu0 0.0
        %2214 = vmatpush.msra.mxu0 0.0
        %2215 = vmatpush.msra.mxu0 0.0
        %2216 = vmatpush.msra.mxu0 %v2199
        %2217 = vmatmul.f32.gmra.mxu0 %v2194
        %v2218 = vpop.f32.mrf.mxu0
        %v2219 = vadd.f32 %v2190, %v2218
        %2220 = vmatmul.f32.gmra.mxu0 %v2197
        %v2221 = vpop.f32.mrf.mxu0
        %v2222 = vadd.f32 %v2190, %v2221
        %2223 = vdwg.mxu0
        %v2224 = vadd.f32 %v1649, %v2219
        %v2225 = vadd.f32 %v1650, %v2222
        %v2226 = vsel %vm260, %v2224, 0.0
        %2227 = vadd.xlane.f32.xlu0 %v2226
        %v2228 = vpop.xlane.xlu0 %2227
        %v2229 = vsel %vm816, %v2225, 0.0
        %2230 = vadd.xlane.f32.xlu0 %v2229
        %v2231 = vpop.xlane.xlu0 %2230
        %v2232 = vmul.f32 %v2228, %v826
        %v2233 = vmul.f32 %v2231, %v826
        %v2234 = vsub.f32 %v2224, %v2232
        %v2235 = vsub.f32 %v2225, %v2233
        %v2236 = vmul.f32 %v2234, %v2234
        %v2237 = vmul.f32 %v2235, %v2235
        %v2238 = vsel %vm260, %v2236, 0.0
        %2239 = vadd.xlane.f32.xlu0 %v2238
        %v2240 = vpop.xlane.xlu0 %2239
        %v2241 = vsel %vm816, %v2237, 0.0
        %2242 = vadd.xlane.f32.xlu0 %v2241
        %v2243 = vpop.xlane.xlu0 %2242
        %v2244 = vmul.f32 %v2240, %v826
        %v2245 = vmul.f32 %v2243, %v826
        %v2246 = vadd.f32 %v2244, 1e-05
        %v2247 = vadd.f32 %v2245, 1e-05
        %v2248 = vrsqrt.pop %v2246
        %v2249 = vmul.f32 %v2248, %v2246
        %v2250 = vmul.f32 %v2249, %v2248
        %v2251 = vmul.f32 0.5, %v2250
        %v2252 = vsub.f32 1.5, %v2251
        %v2253 = vmul.f32 %v2248, %v2252
        %vm2254 = vweird.f32 %v2246
        %vm2255 = vweird.f32 %v2248
        %vm2256 = vmor %vm2254, %vm2255
        %v2257 = vsel %vm2256, %v2248, %v2253
        %v2258 = vrsqrt.pop %v2247
        %v2259 = vmul.f32 %v2258, %v2247
        %v2260 = vmul.f32 %v2259, %v2258
        %v2261 = vmul.f32 0.5, %v2260
        %v2262 = vsub.f32 1.5, %v2261
        %v2263 = vmul.f32 %v2258, %v2262
        %vm2264 = vweird.f32 %v2247
        %vm2265 = vweird.f32 %v2258
        %vm2266 = vmor %vm2264, %vm2265
        %v2267 = vsel %vm2266, %v2258, %v2263
        %v2268 = vmul.f32 %v2234, %v2257
        %v2269 = vmul.f32 %v2235, %v2267
        %v2270 = vld [vmem:[%s3 + $0x10] sm:$0x1]
        %v2271 = vperm.slane %v2270, 0
        %v2272 = vmul.f32 %v2268, %v2271
        %v2273 = vmul.f32 %v2269, %v2271
        %v2274 = vld [vmem:[%s3 + $0x11] sm:$0x1]
        %v2275 = vperm.slane %v2274, 0
        %v2276 = vadd.f32 %v2272, %v2275
        %v2277 = vadd.f32 %v2273, %v2275
        %v2278 = vld [vmem:[%s3 + $0x12] sm:$0x1]
        %v2279 = vperm.slane %v2278, 0
        %2280 = vrot.lane.b32.xlu0 %v254, 56
        %v2281 = vpop.permute.xlu0 %2280
        %v2283 = vsel %vm260, %v2276, 0
        %v2286 = vsel %vm260, %v2277, 0
        %v2288 = vsel %vm267, %v2281, 0
        %2290 = vmatpush.msra.mxu0 0.0
        %2291 = vmatpush.msra.mxu0 0.0
        %2292 = vmatpush.msra.mxu0 0.0
        %2293 = vmatpush.msra.mxu0 0.0
        %2294 = vmatpush.msra.mxu0 0.0
        %2295 = vmatpush.msra.mxu0 0.0
        %2296 = vmatpush.msra.mxu0 0.0
        %2297 = vmatpush.msra.mxu0 0.0
        %2298 = vmatpush.msra.mxu0 0.0
        %2299 = vmatpush.msra.mxu0 0.0
        %2300 = vmatpush.msra.mxu0 0.0
        %2301 = vmatpush.msra.mxu0 0.0
        %2302 = vmatpush.msra.mxu0 0.0
        %2303 = vmatpush.msra.mxu0 0.0
        %2304 = vmatpush.msra.mxu0 0.0
        %2305 = vmatpush.msra.mxu0 %v2288
        %2306 = vmatmul.f32.gmra.mxu0 %v2283
        %v2307 = vpop.f32.mrf.mxu0
        %v2308 = vadd.f32 %v2279, %v2307
        %2309 = vmatmul.f32.gmra.mxu0 %v2286
        %v2310 = vpop.f32.mrf.mxu0
        %v2311 = vadd.f32 %v2279, %v2310
        %2312 = vdwg.mxu0
        %v2313 = vmax.f32 %v2308, 0.0
        %v2314 = vmax.f32 %v2311, 0.0
        %v2315 = vld [vmem:[%s3 + $0x13] sm:$0x1]
        %v2316 = vperm.slane %v2315, 0
        %2317 = vrot.lane.b32.xlu0 %v910, 40
        %v2318 = vpop.permute.xlu0 %2317
        %2319 = vrot.lane.b32.xlu0 %v911, 40
        %v2320 = vpop.permute.xlu0 %2319
        %v2324 = vsel %vm922, %v2313, 0
        %v2327 = vsel %vm922, %v2314, 0
        %2329 = vmatpush.msra.mxu0 0.0
        %2330 = vmatpush.msra.mxu0 0.0
        %2331 = vmatpush.msra.mxu0 0.0
        %2332 = vmatpush.msra.mxu0 0.0
        %2333 = vmatpush.msra.mxu0 0.0
        %2334 = vmatpush.msra.mxu0 0.0
        %2335 = vmatpush.msra.mxu0 0.0
        %2336 = vmatpush.msra.mxu0 0.0
        %2337 = vmatpush.msra.mxu0 0.0
        %2338 = vmatpush.msra.mxu0 0.0
        %2339 = vmatpush.msra.mxu0 0.0
        %2340 = vmatpush.msra.mxu0 0.0
        %2341 = vmatpush.msra.mxu0 0.0
        %2342 = vmatpush.msra.mxu0 0.0
        %2343 = vmatpush.msra.mxu0 %v2320
        %2344 = vmatpush.msra.mxu0 %v2318
        %2345 = vmatmul.f32.gmra.mxu0 %v2324
        %v2346 = vpop.f32.mrf.mxu0
        %v2347 = vadd.f32 %v2316, %v2346
        %2348 = vmatmul.f32.gmra.mxu0 %v2327
        %v2349 = vpop.f32.mrf.mxu0
        %v2350 = vadd.f32 %v2316, %v2349
        %2351 = vdwg.mxu0
        %v2352 = vadd.f32 %v2276, %v2347
        %v2353 = vadd.f32 %v2277, %v2350
        %v2354 = vsel %vm260, %v2352, 0.0
        %2355 = vadd.xlane.f32.xlu0 %v2354
        %v2356 = vpop.xlane.xlu0 %2355
        %v2357 = vsel %vm816, %v2353, 0.0
        %2358 = vadd.xlane.f32.xlu0 %v2357
        %v2359 = vpop.xlane.xlu0 %2358
        %v2360 = vmul.f32 %v2356, %v826
        %v2361 = vmul.f32 %v2359, %v826
        %v2362 = vsub.f32 %v2352, %v2360
        %v2363 = vsub.f32 %v2353, %v2361
        %v2364 = vmul.f32 %v2362, %v2362
        %v2365 = vmul.f32 %v2363, %v2363
        %v2366 = vsel %vm260, %v2364, 0.0
        %2367 = vadd.xlane.f32.xlu0 %v2366
        %v2368 = vpop.xlane.xlu0 %2367
        %v2369 = vsel %vm816, %v2365, 0.0
        %2370 = vadd.xlane.f32.xlu0 %v2369
        %v2371 = vpop.xlane.xlu0 %2370
        %v2372 = vmul.f32 %v2368, %v826
        %v2373 = vmul.f32 %v2371, %v826
        %v2374 = vadd.f32 %v2372, 1e-05
        %v2375 = vadd.f32 %v2373, 1e-05
        %v2376 = vrsqrt.pop %v2374
        %v2377 = vmul.f32 %v2376, %v2374
        %v2378 = vmul.f32 %v2377, %v2376
        %v2379 = vmul.f32 0.5, %v2378
        %v2380 = vsub.f32 1.5, %v2379
        %v2381 = vmul.f32 %v2376, %v2380
        %vm2382 = vweird.f32 %v2374
        %vm2383 = vweird.f32 %v2376
        %vm2384 = vmor %vm2382, %vm2383
        %v2385 = vsel %vm2384, %v2376, %v2381
        %v2386 = vrsqrt.pop %v2375
        %v2387 = vmul.f32 %v2386, %v2375
        %v2388 = vmul.f32 %v2387, %v2386
        %v2389 = vmul.f32 0.5, %v2388
        %v2390 = vsub.f32 1.5, %v2389
        %v2391 = vmul.f32 %v2386, %v2390
        %vm2392 = vweird.f32 %v2375
        %vm2393 = vweird.f32 %v2386
        %vm2394 = vmor %vm2392, %vm2393
        %v2395 = vsel %vm2394, %v2386, %v2391
        %v2396 = vmul.f32 %v2362, %v2385
        %v2397 = vmul.f32 %v2363, %v2395
        %v2398 = vld [vmem:[%s3 + $0x14] sm:$0x1]
        %v2399 = vperm.slane %v2398, 0
        %v2400 = vmul.f32 %v2396, %v2399
        %v2401 = vmul.f32 %v2397, %v2399
        %v2402 = vld [vmem:[%s3 + $0x15] sm:$0x1]
        %v2403 = vperm.slane %v2402, 0
        %v2404 = vadd.f32 %v2400, %v2403
        %v2405 = vadd.f32 %v2401, %v2403
        %v2406 = vld [vmem:[%s3 + $0x16] sm:$0x1]
        %v2407 = vperm.slane %v2406, 0
        %v2408 = vmul.f32 %v2404, %v2407
        %v2409 = vmul.f32 %v2405, %v2407
        %v2410 = vsel %vm260, %v2408, 0.0
        %2411 = vadd.xlane.f32.xlu0 %v2410
        %v2412 = vpop.xlane.xlu0 %2411
        %v2413 = vsel %vm816, %v2409, 0.0
        %2414 = vadd.xlane.f32.xlu0 %v2413
        %v2415 = vpop.xlane.xlu0 %2414
        %v2416 = vld [vmem:[%s3 + $0x17] sm:$0x1]
        %v2417 = vperm.slane %v2416, 0
        %v2418 = vadd.f32 %v2412, %v2417
        %v2419 = vadd.f32 %v2415, %v2417
        %2420 = vxpose.xlu0.b32.start [1/16] %v2418, 128
        %2421 = vxpose.xlu0.b32.cont [2/16] %v2419, 128
        %2422 = vxpose.xlu0.b32.cont [3/16] 0.0, 128
        %2423 = vxpose.xlu0.b32.cont [4/16] 0.0, 128
        %2424 = vxpose.xlu0.b32.cont [5/16] 0.0, 128
        %2425 = vxpose.xlu0.b32.cont [6/16] 0.0, 128
        %2426 = vxpose.xlu0.b32.cont [7/16] 0.0, 128
        %2427 = vxpose.xlu0.b32.cont [8/16] 0.0, 128
        %2428 = vxpose.xlu0.b32.cont [9/16] 0.0, 128
        %2429 = vxpose.xlu0.b32.cont [10/16] 0.0, 128
        %2430 = vxpose.xlu0.b32.cont [11/16] 0.0, 128
        %2431 = vxpose.xlu0.b32.cont [12/16] 0.0, 128
        %2432 = vxpose.xlu0.b32.cont [13/16] 0.0, 128
        %2433 = vxpose.xlu0.b32.cont [14/16] 0.0, 128
        %2434 = vxpose.xlu0.b32.cont [15/16] 0.0, 128
        %2435 = vxpose.xlu0.b32.end [16/16] 0.0, 128
        %v2436 = vpop.trf.xlu0
        %v2437 = vpop.trf.xlu0
        %v2438 = vpop.trf.xlu0
        %v2439 = vpop.trf.xlu0
        %v2440 = vpop.trf.xlu0
        %v2441 = vpop.trf.xlu0
        %v2442 = vpop.trf.xlu0
        %v2443 = vpop.trf.xlu0
        %v2444 = vpop.trf.xlu0
        %v2445 = vpop.trf.xlu0
        %v2446 = vpop.trf.xlu0
        %v2447 = vpop.trf.xlu0
        %v2448 = vpop.trf.xlu0
        %v2449 = vpop.trf.xlu0
        %v2450 = vpop.trf.xlu0
        %v2451 = vpop.trf.xlu0
        %v2452 = vxor.u32 %v2436, 2147483648
        %v2453 = vmul.f32 %v2452, 1.442695
        %v2454 = vpow.pop %v2453
        %v2455 = vadd.f32 %v2454, 1.0
        %v2456 = vrcp.pop %v2455
        %v2457 = vmul.f32 %v2455, %v2456
        %v2458 = vsub.f32 1.0, %v2457
        %v2459 = vmul.f32 %v2456, %v2458
        %v2460 = vadd.f32 %v2456, %v2459
        %vm2461 = vweird.f32 %v2455
        %vm2462 = vweird.f32 %v2456
        %vm2463 = vmor %vm2461, %vm2462
        %v2464 = vsel %vm2463, %v2456, %v2460
        %v2465 = vand.u32 2147483647, %v2455
        %vm2466 = vcmp.eq.f32.partialorder %v2465, 8.507059e+37
        %v2467 = vand.u32 %v2455, 2147483648
        %v2468 = vor.u32 1.1754944e-38, %v2467
        %v2469 = vsel %vm2466, %v2468, %v2464
        %v2470 = vmul.f32 1.0, %v2469
        %vm2471 = vcmask 73728
        %2472 = vst.msk [vmem:[%s196] sm:$0x1] %vm2471, %v2470
        %s2473 = sand.u32 %s120, 1
        %s2474 = scalar_lea.sflag [#allocation3], %s2473
        %s2475 = sand.u32 %s120, 1
        %s2476 = scalar_lea.vmem [#allocation2], %s2475
        // Predicated region
        $region37: #{forward.1} parent=35 // pred_check
          %p2477 = pneg %p130
        $region38: #{forward.1} parent=35 // pred_check_branch
          %2479 = sbr.rel (%p2477) target = $region40
        $region39: #{forward.1} parent=35 // pred_region
          %2481 = vsyncadd %s2474, 0
          %s2482 = scalar_lea.hbm %s4, %s18
          %s2484 = sshll.u32 %s2476, 4
          %s2485 = int_to_ptr.vmem [resolvable:$true] %s2484
          %s2486 = sshll.u32 %s2482, 4
          %s2487 = int_to_ptr.hbm [resolvable:$true] %s2486
          %2489 = dma.vmem_to_hbm [thread:$0]  %s2485, 16, %s2487, %s2474
        $region40: #{forward.1} parent=35 // pred_fallthru
          _
      $region36: #{forward.1} parent=5 // pred_fallthru
        _
      %p2490 = scmp.le.s32.totalorder 2, %s13
      // Predicated region
      $region41: #{forward.1} parent=5 // pred_check
        %p2491 = pneg %p2490
      $region42: #{forward.1} parent=5 // pred_check_branch
        %2493 = sbr.rel (%p2491) target = $region44
      $region43: #{forward.1} parent=5 // pred_region
        %s2494 = ssub.s32 %s13, 2
        // Predicated region
        $region45: #{forward.1} parent=43 // pred_check
          %p2495 = pneg %p136
        $region46: #{forward.1} parent=43 // pred_check_branch
          %2497 = sbr.rel (%p2495) target = $region48
        $region47: #{forward.1} parent=43 // pred_region
          %s2498 = sand.u32 %s121, 1
          %s2499 = scalar_lea.sflag [#allocation3], %s2498
          %s2500 = sand.u32 %s121, 1
          %s2501 = scalar_lea.vmem [#allocation2], %s2500
          %2503 = dma.done %s2499, 16
        $region48: #{forward.1} parent=43 // pred_fallthru
          _
      $region44: #{forward.1} parent=5 // pred_fallthru
        _
    $region6: #{forward.1} parent=1 // loop_footer
      %s17 = sadd.s32 1, %s13
    $region7: #{forward.1} parent=1 // loop_footer_branch
      %12 = sbr.rel target = $region3
    $region8: #{forward.1} parent=1 // loop_exit
      _
    %2504 = vsyncpa [#allocation3], 1
    %s2505 = scalar_lea.sflag [#allocation3], 1
    %2506 = vsyncpa %s2505, 1

</llo_original>
